<compile_context>
chip_gen: v7x
topology: tpu7x:2x2x1
jax: 0.10.0
libtpu: 0.0.40
codegen_flags: <defaults>
</compile_context>

<pallas_src>
import math
from functools import partial

import numpy as np
import jax
import jax.numpy as jnp
from jax.experimental import pallas as pl
from jax.experimental.pallas import tpu as pltpu

# ------------------------- problem sizes -------------------------
N_NODES = 16                     # number of graph nodes
E_EDGES = 32                     # number of edges
MUL = 8                          # multiplicity of 0e and 1o irreps (in & out)
D_IN = 4 * MUL                   # 32 = 8 scalars + 8 vectors (3 comps, u-major)
D_EDGE = 4                       # 1x0e + 1x1o
EF_PAD = 8                       # edge-feature lanes padded to a full sublane tile
RAD_EMBED = 16
RAD_HIDDEN = 32
W_NUMEL = 4 * MUL * MUL          # 256

# tensor-product expansion layout: 10 blocks of 64 lanes (lane = u*8 + w within a block)
N_BLK = 10
BLK = MUL * MUL                  # 64
PROD_W = N_BLK * BLK             # 640
OUT_W = 128                      # lane-dense, padded output width

# e3nn normalization constants (irrep_normalization='component',
# path_normalization='element'); wigner-3j for (0,0,0),(0,1,1),(1,0,1),(1,1,0).
INV_SQRT3 = 1.0 / math.sqrt(3.0)
C_PATH_0E = math.sqrt(1.0 / 16.0)        # sqrt(dim(0e) / (8*1 + 8*1))
C_PATH_1O = math.sqrt(3.0 / 16.0)        # sqrt(dim(1o) / (8*1 + 8*1))
INV_SQRT_MUL = 1.0 / math.sqrt(MUL)      # o3.Linear / FullyConnectedNet fan-in scaling

# e3nn normalize2mom constant for SiLU (second-moment normalization of the activation)
_z = np.random.default_rng(0).standard_normal(1_000_000)
SILU_CST = float(1.0 / np.sqrt(np.mean((_z / (1.0 + np.exp(-_z))) ** 2)))


# ------------------------- constant replication / reduction matrices -------------------------
def _build_tp_constants():
    """Constant matrices expressing the full tensor product in e3nn's u-major layouts:
        x_rep = onehot_src @ (nf @ XREP)      (E, 640)
        y_rep = edge_feat_padded @ YREP       (E, 640)
        w_rep = silu(radial) @ (wm2' @ WREP)  (E, 640)   [path constants folded into WREP]
        edge_out = (x_rep * y_rep * w_rep) @ RED          (E, 128), RED is pure 0/1.
    Block b (64 lanes, lane = u*8 + w) pairs (x_b[u], y_b, W_{p(b)}[u,w])."""
    blocks = []
    # b0: 0e x 0e -> 0e
    blocks.append((lambda u: u, 0, 0, lambda w: w, C_PATH_0E))
    # b1..3: 0e x 1o -> 1o (one block per m)
    for m in range(3):
        blocks.append((lambda u: u, 1 + m, 1,
                       lambda w, m=m: MUL + w * 3 + m, C_PATH_1O * INV_SQRT3))
    # b4..6: 1o x 0e -> 1o
    for m in range(3):
        blocks.append((lambda u, m=m: MUL + u * 3 + m, 0, 2,
                       lambda w, m=m: MUL + w * 3 + m, C_PATH_1O * INV_SQRT3))
    # b7..9: 1o x 1o -> 0e
    for m in range(3):
        blocks.append((lambda u, m=m: MUL + u * 3 + m, 1 + m, 3,
                       lambda w: w, C_PATH_0E * INV_SQRT3))

    xrep = np.zeros((D_IN, PROD_W), np.float32)
    yrep = np.zeros((EF_PAD, PROD_W), np.float32)
    wrep = np.zeros((W_NUMEL, PROD_W), np.float32)   # path constants folded here
    red = np.zeros((PROD_W, OUT_W), np.float32)      # pure 0/1 reduce + output layout
    for b, (xlane, ylane, path, outlane, cst) in enumerate(blocks):
        for u in range(MUL):
            for w in range(MUL):
                col = b * BLK + u * MUL + w
                xrep[xlane(u), col] = 1.0
                yrep[ylane, col] = 1.0
                wrep[path * BLK + u * MUL + w, col] = cst
                red[col, outlane(w)] = 1.0
    return xrep, yrep, wrep, red


_XREP, _YREP, _WREP, _RED = _build_tp_constants()


# ------------------------- Pallas kernel -------------------------
def gcn_kernel(ohs_ref, ohdT_ref, ef_ref, ee_ref, nf_ref,
               xrep_ref, yrep_ref, wm1_ref, wm2red_ref, red_ref, wsc_ref,
               out_ref):
    f32 = jnp.float32

    # ---- radial MLP -> replicated TP weights (fan-in, SiLU-moment, path constants
    #      and the 'uvw'->block replication are all pre-folded into wm2red) ----
    h = jax.nn.silu(jnp.dot(ee_ref[...], wm1_ref[...], preferred_element_type=f32))
    w_rep = jnp.dot(h, wm2red_ref[...], preferred_element_type=f32)            # (E, 640)

    # ---- x path: replicate node features into the 10 TP blocks, then gather per
    #      edge with the source one-hot (both MXU matmuls, no wrapper gather) ----
    nf_rep = jnp.dot(nf_ref[...], xrep_ref[...], preferred_element_type=f32)   # (N, 640)
    x_rep = jnp.dot(ohs_ref[...], nf_rep, preferred_element_type=f32)          # (E, 640)

    # ---- y path: replicate the 4 edge-feature lanes into the TP blocks ----
    y_rep = jnp.dot(ef_ref[...], yrep_ref[...], preferred_element_type=f32)    # (E, 640)

    # ---- tensor product: full-lane VPU product + constant 0/1 MXU reduction ----
    # TODO(synk): for large E, chunk this 640-lane product/reduce in 128-lane slices
    # to bound vreg live ranges; at E=32 it is negligible.
    prod = x_rep * y_rep * w_rep                                               # (E, 640)
    edge_out = jnp.dot(prod, red_ref[...], preferred_element_type=f32)         # (E, 128)

    # ---- scatter-sum over destination nodes: plain (N,E)@(E,128) matmul ----
    scat = jnp.dot(ohdT_ref[...], edge_out, preferred_element_type=f32)        # (N, 128)

    # ---- self-connection (o3.Linear), block-diagonal weights, layout folded in ----
    sc = jnp.dot(nf_ref[...], wsc_ref[...], preferred_element_type=f32)        # (N, 128)

    out_ref[...] = scat + sc


# ------------------------- wrapper -------------------------
@partial(jax.jit, static_argnums=(5,))
def gcn_layer_forward(edge_index, node_feat, edge_feat, edge_embed, params, dim_size):
    src, dst = edge_index[0], edge_index[1]
    E = edge_feat.shape[0]
    N = dim_size

    # glue (fused under jit): one-hots from indices, zero feature gathers/transposes.
    ohs = jax.nn.one_hot(src, N, dtype=jnp.float32)                 # (E, N)
    ohdT = jax.nn.one_hot(dst, N, dtype=jnp.float32).T              # (N, E)
    ef_pad = jnp.pad(edge_feat, ((0, 0), (0, EF_PAD - D_EDGE)))     # (E, 8)

    # fold normalization constants / replication matrices into the weights (trace-time)
    wm1 = params["wm1"] * (1.0 / math.sqrt(RAD_EMBED))                              # (16, 32)
    wm2red = (params["wm2"] * (SILU_CST / math.sqrt(RAD_HIDDEN))) @ jnp.asarray(_WREP)  # (32, 640)

    wsc = jnp.zeros((D_IN, OUT_W), jnp.float32)
    wsc = wsc.at[:MUL, :MUL].set(params["wsc0"] * INV_SQRT_MUL)
    for m in range(3):
        r = MUL + np.arange(MUL) * 3 + m
        wsc = wsc.at[r[:, None], r[None, :]].set(params["wsc1"] * INV_SQRT_MUL)

    full = lambda i: (0, 0)
    out = pl.pallas_call(
        gcn_kernel,
        out_shape=jax.ShapeDtypeStruct((N, OUT_W), jnp.float32),
        grid=(1,),
        in_specs=[
            pl.BlockSpec((E, N), full),                  # src one-hot
            pl.BlockSpec((N, E), full),                  # dst one-hot (transposed)
            pl.BlockSpec((E, EF_PAD), full),             # edge features (padded)
            pl.BlockSpec((E, RAD_EMBED), full),          # radial embedding
            pl.BlockSpec((N, D_IN), full),               # node features (e3nn layout)
            pl.BlockSpec((D_IN, PROD_W), full),          # x replication matrix
            pl.BlockSpec((EF_PAD, PROD_W), full),        # y replication matrix
            pl.BlockSpec((RAD_EMBED, RAD_HIDDEN), full), # radial layer 1 (folded)
            pl.BlockSpec((RAD_HIDDEN, PROD_W), full),    # radial layer 2 @ WREP (folded)
            pl.BlockSpec((PROD_W, OUT_W), full),         # 0/1 reduce matrix
            pl.BlockSpec((D_IN, OUT_W), full),           # self-connection (folded)
        ],
        out_specs=pl.BlockSpec((N, OUT_W), full),
        compiler_params=pltpu.CompilerParams(dimension_semantics=("arbitrary",)),
    )(ohs, ohdT, ef_pad, edge_embed, node_feat,
      jnp.asarray(_XREP), jnp.asarray(_YREP), wm1, wm2red, jnp.asarray(_RED), wsc)

    # drop lane padding; output is already in e3nn's u-major layout
    return out[:, :D_IN]


# ------------------------- pure-JAX reference -------------------------
def gcn_layer_reference(edge_index, node_feat, edge_feat, edge_embed, params, dim_size):
    src, dst = edge_index[0], edge_index[1]
    h = edge_embed @ params["wm1"] / math.sqrt(RAD_EMBED)
    h = SILU_CST * jax.nn.silu(h)
    w = h @ params["wm2"] / math.sqrt(RAD_HIDDEN)                               # (E, 256)

    x = node_feat[src]
    xs = x[:, :MUL]
    xv = x[:, MUL:].reshape(-1, MUL, 3)
    ys = edge_feat[:, 0]
    yv = edge_feat[:, 1:4]
    w0 = w[:, 0:64].reshape(-1, MUL, MUL)
    w1 = w[:, 64:128].reshape(-1, MUL, MUL)
    w2 = w[:, 128:192].reshape(-1, MUL, MUL)
    w3 = w[:, 192:256].reshape(-1, MUL, MUL)

    o0 = C_PATH_0E * ys[:, None] * jnp.einsum('eu,euw->ew', xs, w0)
    o0 = o0 + C_PATH_0E * INV_SQRT3 * jnp.einsum('euk,ek,euw->ew', xv, yv, w3)
    o1 = C_PATH_1O * INV_SQRT3 * jnp.einsum('eu,euw->ew', xs, w1)[:, :, None] * yv[:, None, :]
    o1 = o1 + C_PATH_1O * INV_SQRT3 * ys[:, None, None] * jnp.einsum('euk,euw->ewk', xv, w2)
    edge_out = jnp.concatenate([o0, o1.reshape(-1, 3 * MUL)], axis=1)

    out = jax.ops.segment_sum(edge_out, dst, num_segments=dim_size)

    sc0 = node_feat[:, :MUL] @ params["wsc0"] * INV_SQRT_MUL
    sc1 = jnp.einsum('num,uw->nwm', node_feat[:, MUL:].reshape(dim_size, MUL, 3),
                     params["wsc1"]) * INV_SQRT_MUL
    return out + jnp.concatenate([sc0, sc1.reshape(dim_size, 3 * MUL)], axis=1)


# ------------------------- main -------------------------
if __name__ == "__main__":
    key = jax.random.PRNGKey(0)
    ks = jax.random.split(key, 8)

    node_feat = jax.random.normal(ks[0], (N_NODES, D_IN), jnp.float32)
    edge_index = jax.random.randint(ks[1], (2, E_EDGES), 0, N_NODES, dtype=jnp.int32)
    edge_feat = jax.random.normal(ks[2], (E_EDGES, D_EDGE), jnp.float32)
    edge_embed = jax.random.normal(ks[3], (E_EDGES, RAD_EMBED), jnp.float32)

    # e3nn-style init: standard-normal weights; fan-in scaling folded in the forward.
    params = dict(
        wm1=jax.random.normal(ks[4], (RAD_EMBED, RAD_HIDDEN), jnp.float32),
        wm2=jax.random.normal(ks[5], (RAD_HIDDEN, W_NUMEL), jnp.float32),
        wsc0=jax.random.normal(ks[6], (MUL, MUL), jnp.float32),
        wsc1=jax.random.normal(ks[7], (MUL, MUL), jnp.float32),
    )

    out = gcn_layer_forward(edge_index, node_feat, edge_feat, edge_embed, params, N_NODES)
    out = jax.block_until_ready(out)

    ref = jax.block_until_ready(
        gcn_layer_reference(edge_index, node_feat, edge_feat, edge_embed, params, N_NODES))
    np.testing.assert_allclose(np.asarray(out), np.asarray(ref), rtol=1e-3, atol=1e-3)

    # TODO(synk): general o3.Irreps parsing / arbitrary-l Clebsch-Gordan machinery is not
    # reproduced; the kernel is specialized to 8x0e+8x1o (x) 1x0e+1x1o -> 8x0e+8x1o.
    print("KERNEL_OK")
</pallas_src>

<mosaic_0001>
module attributes {stable_mosaic.version = 11 : i64} {
  func.func @gcn_kernel(%arg0: i32, %arg1: memref<32x16xf32, #tpu.memory_space<vmem>>, %arg2: memref<16x32xf32, #tpu.memory_space<vmem>>, %arg3: memref<32x8xf32, #tpu.memory_space<vmem>>, %arg4: memref<32x16xf32, #tpu.memory_space<vmem>>, %arg5: memref<16x32xf32, #tpu.memory_space<vmem>>, %arg6: memref<32x640xf32, #tpu.memory_space<vmem>>, %arg7: memref<8x640xf32, #tpu.memory_space<vmem>>, %arg8: memref<16x32xf32, #tpu.memory_space<vmem>>, %arg9: memref<32x640xf32, #tpu.memory_space<vmem>>, %arg10: memref<640x128xf32, #tpu.memory_space<vmem>>, %arg11: memref<32x128xf32, #tpu.memory_space<vmem>>, %arg12: memref<16x128xf32, #tpu.memory_space<vmem>>) attributes {dimension_semantics = [#tpu.dimension_semantics<arbitrary>], iteration_bounds = array<i64: 1>, scalar_prefetch = 0 : i64, scratch_operands = 0 : i64, tpu.core_type = #tpu.core_type<tc>, window_params = [{pipeline_mode = #tpu.pipeline_mode<synchronous>, transform_indices = @transform_0, window_bounds = array<i64: 32, 16>}, {pipeline_mode = #tpu.pipeline_mode<synchronous>, transform_indices = @transform_1, window_bounds = array<i64: 16, 32>}, {pipeline_mode = #tpu.pipeline_mode<synchronous>, transform_indices = @transform_2, window_bounds = array<i64: 32, 8>}, {pipeline_mode = #tpu.pipeline_mode<synchronous>, transform_indices = @transform_3, window_bounds = array<i64: 32, 16>}, {pipeline_mode = #tpu.pipeline_mode<synchronous>, transform_indices = @transform_4, window_bounds = array<i64: 16, 32>}, {pipeline_mode = #tpu.pipeline_mode<synchronous>, transform_indices = @transform_5, window_bounds = array<i64: 32, 640>}, {pipeline_mode = #tpu.pipeline_mode<synchronous>, transform_indices = @transform_6, window_bounds = array<i64: 8, 640>}, {pipeline_mode = #tpu.pipeline_mode<synchronous>, transform_indices = @transform_7, window_bounds = array<i64: 16, 32>}, {pipeline_mode = #tpu.pipeline_mode<synchronous>, transform_indices = @transform_8, window_bounds = array<i64: 32, 640>}, {pipeline_mode = #tpu.pipeline_mode<synchronous>, transform_indices = @transform_9, window_bounds = array<i64: 640, 128>}, {pipeline_mode = #tpu.pipeline_mode<synchronous>, transform_indices = @transform_10, window_bounds = array<i64: 32, 128>}, {pipeline_mode = #tpu.pipeline_mode<synchronous>, transform_indices = @transform_11, window_bounds = array<i64: 16, 128>}]} {
    %c0 = arith.constant 0 : index
    %c0_0 = arith.constant 0 : index
    %0 = vector.load %arg4[%c0, %c0_0] : memref<32x16xf32, #tpu.memory_space<vmem>>, vector<32x16xf32>
    %c0_1 = arith.constant 0 : index
    %c0_2 = arith.constant 0 : index
    %1 = vector.load %arg8[%c0_1, %c0_2] : memref<16x32xf32, #tpu.memory_space<vmem>>, vector<16x32xf32>
    %cst = arith.constant dense<0.000000e+00> : vector<32x32xf32>
    %2 = tpu.matmul %0, %1, %cst {dimension_numbers = #tpu.dot_dimension_numbers<[1], [0], [0], [1], [0, 0, 1, 1], [], []>} : vector<32x16xf32>, vector<16x32xf32>, vector<32x32xf32> -> vector<32x32xf32>
    %3 = arith.negf %2 : vector<32x32xf32>
    %4 = math.exp %3 : vector<32x32xf32>
    %cst_3 = arith.constant 1.000000e+00 : f32
    %5 = vector.broadcast %cst_3 : f32 to vector<32x32xf32>
    %6 = arith.addf %5, %4 : vector<32x32xf32>
    %7 = arith.divf %5, %6 : vector<32x32xf32>
    %8 = arith.mulf %2, %7 : vector<32x32xf32>
    %c0_4 = arith.constant 0 : index
    %c0_5 = arith.constant 0 : index
    %9 = vector.load %arg9[%c0_4, %c0_5] : memref<32x640xf32, #tpu.memory_space<vmem>>, vector<32x640xf32>
    %cst_6 = arith.constant dense<0.000000e+00> : vector<32x640xf32>
    %10 = tpu.matmul %8, %9, %cst_6 {dimension_numbers = #tpu.dot_dimension_numbers<[1], [0], [0], [1], [0, 0, 1, 1], [], []>} : vector<32x32xf32>, vector<32x640xf32>, vector<32x640xf32> -> vector<32x640xf32>
    %c0_7 = arith.constant 0 : index
    %c0_8 = arith.constant 0 : index
    %11 = vector.load %arg5[%c0_7, %c0_8] : memref<16x32xf32, #tpu.memory_space<vmem>>, vector<16x32xf32>
    %c0_9 = arith.constant 0 : index
    %c0_10 = arith.constant 0 : index
    %12 = vector.load %arg6[%c0_9, %c0_10] : memref<32x640xf32, #tpu.memory_space<vmem>>, vector<32x640xf32>
    %cst_11 = arith.constant dense<0.000000e+00> : vector<16x640xf32>
    %13 = tpu.matmul %11, %12, %cst_11 {dimension_numbers = #tpu.dot_dimension_numbers<[1], [0], [0], [1], [0, 0, 1, 1], [], []>} : vector<16x32xf32>, vector<32x640xf32>, vector<16x640xf32> -> vector<16x640xf32>
    %c0_12 = arith.constant 0 : index
    %c0_13 = arith.constant 0 : index
    %14 = vector.load %arg1[%c0_12, %c0_13] : memref<32x16xf32, #tpu.memory_space<vmem>>, vector<32x16xf32>
    %cst_14 = arith.constant dense<0.000000e+00> : vector<32x640xf32>
    %15 = tpu.matmul %14, %13, %cst_14 {dimension_numbers = #tpu.dot_dimension_numbers<[1], [0], [0], [1], [0, 0, 1, 1], [], []>} : vector<32x16xf32>, vector<16x640xf32>, vector<32x640xf32> -> vector<32x640xf32>
    %c0_15 = arith.constant 0 : index
    %c0_16 = arith.constant 0 : index
    %16 = vector.load %arg3[%c0_15, %c0_16] : memref<32x8xf32, #tpu.memory_space<vmem>>, vector<32x8xf32>
    %c0_17 = arith.constant 0 : index
    %c0_18 = arith.constant 0 : index
    %17 = vector.load %arg7[%c0_17, %c0_18] : memref<8x640xf32, #tpu.memory_space<vmem>>, vector<8x640xf32>
    %cst_19 = arith.constant dense<0.000000e+00> : vector<32x640xf32>
    %18 = tpu.matmul %16, %17, %cst_19 {dimension_numbers = #tpu.dot_dimension_numbers<[1], [0], [0], [1], [0, 0, 1, 1], [], []>} : vector<32x8xf32>, vector<8x640xf32>, vector<32x640xf32> -> vector<32x640xf32>
    %19 = arith.mulf %15, %18 : vector<32x640xf32>
    %20 = arith.mulf %19, %10 : vector<32x640xf32>
    %c0_20 = arith.constant 0 : index
    %c0_21 = arith.constant 0 : index
    %21 = vector.load %arg10[%c0_20, %c0_21] : memref<640x128xf32, #tpu.memory_space<vmem>>, vector<640x128xf32>
    %cst_22 = arith.constant dense<0.000000e+00> : vector<32x128xf32>
    %22 = tpu.matmul %20, %21, %cst_22 {dimension_numbers = #tpu.dot_dimension_numbers<[1], [0], [0], [1], [0, 0, 1, 1], [], []>} : vector<32x640xf32>, vector<640x128xf32>, vector<32x128xf32> -> vector<32x128xf32>
    %c0_23 = arith.constant 0 : index
    %c0_24 = arith.constant 0 : index
    %23 = vector.load %arg2[%c0_23, %c0_24] : memref<16x32xf32, #tpu.memory_space<vmem>>, vector<16x32xf32>
    %cst_25 = arith.constant dense<0.000000e+00> : vector<16x128xf32>
    %24 = tpu.matmul %23, %22, %cst_25 {dimension_numbers = #tpu.dot_dimension_numbers<[1], [0], [0], [1], [0, 0, 1, 1], [], []>} : vector<16x32xf32>, vector<32x128xf32>, vector<16x128xf32> -> vector<16x128xf32>
    %c0_26 = arith.constant 0 : index
    %c0_27 = arith.constant 0 : index
    %25 = vector.load %arg5[%c0_26, %c0_27] : memref<16x32xf32, #tpu.memory_space<vmem>>, vector<16x32xf32>
    %c0_28 = arith.constant 0 : index
    %c0_29 = arith.constant 0 : index
    %26 = vector.load %arg11[%c0_28, %c0_29] : memref<32x128xf32, #tpu.memory_space<vmem>>, vector<32x128xf32>
    %cst_30 = arith.constant dense<0.000000e+00> : vector<16x128xf32>
    %27 = tpu.matmul %25, %26, %cst_30 {dimension_numbers = #tpu.dot_dimension_numbers<[1], [0], [0], [1], [0, 0, 1, 1], [], []>} : vector<16x32xf32>, vector<32x128xf32>, vector<16x128xf32> -> vector<16x128xf32>
    %28 = arith.addf %24, %27 : vector<16x128xf32>
    %c0_31 = arith.constant 0 : index
    %c0_32 = arith.constant 0 : index
    %29 = vector.load %arg12[%c0_31, %c0_32] : memref<16x128xf32, #tpu.memory_space<vmem>>, vector<16x128xf32>
    tpu.vector_store %arg12[%c0_31, %c0_32], %28 {strides = array<i32>} : memref<16x128xf32, #tpu.memory_space<vmem>>, vector<16x128xf32>,
    return
  }
  func.func @transform_0(%arg0: i32) -> (i32, i32) {
    %c0_i32 = arith.constant 0 : i32
    %c0_i32_0 = arith.constant 0 : i32
    %c0_i32_1 = arith.constant 0 : i32
    return %c0_i32, %c0_i32_0 : i32, i32
  }
  func.func @transform_1(%arg0: i32) -> (i32, i32) {
    %c0_i32 = arith.constant 0 : i32
    %c0_i32_0 = arith.constant 0 : i32
    %c0_i32_1 = arith.constant 0 : i32
    return %c0_i32, %c0_i32_0 : i32, i32
  }
  func.func @transform_2(%arg0: i32) -> (i32, i32) {
    %c0_i32 = arith.constant 0 : i32
    %c0_i32_0 = arith.constant 0 : i32
    %c0_i32_1 = arith.constant 0 : i32
    return %c0_i32, %c0_i32_0 : i32, i32
  }
  func.func @transform_3(%arg0: i32) -> (i32, i32) {
    %c0_i32 = arith.constant 0 : i32
    %c0_i32_0 = arith.constant 0 : i32
    %c0_i32_1 = arith.constant 0 : i32
    return %c0_i32, %c0_i32_0 : i32, i32
  }
  func.func @transform_4(%arg0: i32) -> (i32, i32) {
    %c0_i32 = arith.constant 0 : i32
    %c0_i32_0 = arith.constant 0 : i32
    %c0_i32_1 = arith.constant 0 : i32
    return %c0_i32, %c0_i32_0 : i32, i32
  }
  func.func @transform_5(%arg0: i32) -> (i32, i32) {
    %c0_i32 = arith.constant 0 : i32
    %c0_i32_0 = arith.constant 0 : i32
    %c0_i32_1 = arith.constant 0 : i32
    return %c0_i32, %c0_i32_0 : i32, i32
  }
  func.func @transform_6(%arg0: i32) -> (i32, i32) {
    %c0_i32 = arith.constant 0 : i32
    %c0_i32_0 = arith.constant 0 : i32
    %c0_i32_1 = arith.constant 0 : i32
    return %c0_i32, %c0_i32_0 : i32, i32
  }
  func.func @transform_7(%arg0: i32) -> (i32, i32) {
    %c0_i32 = arith.constant 0 : i32
    %c0_i32_0 = arith.constant 0 : i32
    %c0_i32_1 = arith.constant 0 : i32
    return %c0_i32, %c0_i32_0 : i32, i32
  }
  func.func @transform_8(%arg0: i32) -> (i32, i32) {
    %c0_i32 = arith.constant 0 : i32
    %c0_i32_0 = arith.constant 0 : i32
    %c0_i32_1 = arith.constant 0 : i32
    return %c0_i32, %c0_i32_0 : i32, i32
  }
  func.func @transform_9(%arg0: i32) -> (i32, i32) {
    %c0_i32 = arith.constant 0 : i32
    %c0_i32_0 = arith.constant 0 : i32
    %c0_i32_1 = arith.constant 0 : i32
    return %c0_i32, %c0_i32_0 : i32, i32
  }
  func.func @transform_10(%arg0: i32) -> (i32, i32) {
    %c0_i32 = arith.constant 0 : i32
    %c0_i32_0 = arith.constant 0 : i32
    %c0_i32_1 = arith.constant 0 : i32
    return %c0_i32, %c0_i32_0 : i32, i32
  }
  func.func @transform_11(%arg0: i32) -> (i32, i32) {
    %c0_i32 = arith.constant 0 : i32
    %c0_i32_0 = arith.constant 0 : i32
    %c0_i32_1 = arith.constant 0 : i32
    return %c0_i32, %c0_i32_0 : i32, i32
  }
}

</mosaic_0001>

<llo_original>
// kernel: gcn_layer_forward.1
$region0: #{gcn_layer_forward.1}
  #allocation0 [shape = 'u32[]', space=smem, size = 0x4, offset = 0x4, fixed_abs, tag = 'smem constant byte address 0x4 - core index']
  #allocation1 [shape = 'u32[144,128]{1,0:T(1,128)}', space=vmem, size = 0x12000, scoped, tag = 'internal scratch']
  %s0 = inlined_call_operand.vmem [shape: f32[32,16], index: 0, kind: input, shape index: {}]
  %s1 = inlined_call_operand.vmem [shape: f32[16,32], index: 1, kind: input, shape index: {}]
  %s2 = inlined_call_operand.vmem [shape: f32[32,8], index: 2, kind: input, shape index: {}]
  %s3 = inlined_call_operand.vmem [shape: f32[32,16], index: 3, kind: input, shape index: {}]
  %s4 = inlined_call_operand.vmem [shape: f32[16,32], index: 4, kind: input, shape index: {}]
  %s5 = inlined_call_operand.vmem [shape: f32[32,640], index: 5, kind: input, shape index: {}]
  %s6 = inlined_call_operand.vmem [shape: f32[8,640], index: 6, kind: input, shape index: {}]
  %s7 = inlined_call_operand.vmem [shape: f32[16,32], index: 7, kind: input, shape index: {}]
  %s8 = inlined_call_operand.vmem [shape: f32[32,640], index: 8, kind: input, shape index: {}]
  %s9 = inlined_call_operand.vmem [shape: f32[640,128], index: 9, kind: input, shape index: {}]
  %s10 = inlined_call_operand.vmem [shape: f32[32,128], index: 10, kind: input, shape index: {}]
  %s11 = inlined_call_operand.hbm [shape: f32[16,128], index: 11, kind: output, shape index: {}]
  %s12 = sld [smem:[#allocation0]]
  $region54: #{gcn_layer_forward.1} parent=0
    _
  %s14 = ssub.s32 1, %s12
  %s15 = scalar_select 0, %s14, %s12
  $region1: #{gcn_layer_forward.1} parent=0
    #allocation2 [shape = 'u8[8192]{0}', space=vmem, size = 0x2000, scoped, tag = 'output window, operand 0, single buffered']
    #allocation3 [shape = 's32[1]{0}', space=sflag, size = 0x4, scoped, tag = 'scoped memory for gcn_layer_forward.1']
    %16 = vsyncpa [#allocation3], 0
    // Predicated region
    $region2: #{gcn_layer_forward.1} parent=1 // pred_check
      _
    $region3: #{gcn_layer_forward.1} parent=1 // pred_check_branch
      %18 = sbr.rel (0) target = $region5
    $region4: #{gcn_layer_forward.1} parent=1 // pred_region
      _
    $region5: #{gcn_layer_forward.1} parent=1 // pred_fallthru
      _
    // Predicated region
    $region6: #{gcn_layer_forward.1} parent=1 // pred_check
      _
    $region7: #{gcn_layer_forward.1} parent=1 // pred_check_branch
      %20 = sbr.rel (0) target = $region9
    $region8: #{gcn_layer_forward.1} parent=1 // pred_region
      _
    $region9: #{gcn_layer_forward.1} parent=1 // pred_fallthru
      _
    // Predicated region
    $region10: #{gcn_layer_forward.1} parent=1 // pred_check
      _
    $region11: #{gcn_layer_forward.1} parent=1 // pred_check_branch
      %22 = sbr.rel (0) target = $region13
    $region12: #{gcn_layer_forward.1} parent=1 // pred_region
      _
    $region13: #{gcn_layer_forward.1} parent=1 // pred_fallthru
      _
    // Predicated region
    $region14: #{gcn_layer_forward.1} parent=1 // pred_check
      _
    $region15: #{gcn_layer_forward.1} parent=1 // pred_check_branch
      %24 = sbr.rel (0) target = $region17
    $region16: #{gcn_layer_forward.1} parent=1 // pred_region
      _
    $region17: #{gcn_layer_forward.1} parent=1 // pred_fallthru
      _
    // Predicated region
    $region18: #{gcn_layer_forward.1} parent=1 // pred_check
      _
    $region19: #{gcn_layer_forward.1} parent=1 // pred_check_branch
      %26 = sbr.rel (0) target = $region21
    $region20: #{gcn_layer_forward.1} parent=1 // pred_region
      _
    $region21: #{gcn_layer_forward.1} parent=1 // pred_fallthru
      _
    // Predicated region
    $region22: #{gcn_layer_forward.1} parent=1 // pred_check
      _
    $region23: #{gcn_layer_forward.1} parent=1 // pred_check_branch
      %28 = sbr.rel (0) target = $region25
    $region24: #{gcn_layer_forward.1} parent=1 // pred_region
      _
    $region25: #{gcn_layer_forward.1} parent=1 // pred_fallthru
      _
    // Predicated region
    $region26: #{gcn_layer_forward.1} parent=1 // pred_check
      _
    $region27: #{gcn_layer_forward.1} parent=1 // pred_check_branch
      %30 = sbr.rel (0) target = $region29
    $region28: #{gcn_layer_forward.1} parent=1 // pred_region
      _
    $region29: #{gcn_layer_forward.1} parent=1 // pred_fallthru
      _
    // Predicated region
    $region30: #{gcn_layer_forward.1} parent=1 // pred_check
      _
    $region31: #{gcn_layer_forward.1} parent=1 // pred_check_branch
      %32 = sbr.rel (0) target = $region33
    $region32: #{gcn_layer_forward.1} parent=1 // pred_region
      _
    $region33: #{gcn_layer_forward.1} parent=1 // pred_fallthru
      _
    // Predicated region
    $region34: #{gcn_layer_forward.1} parent=1 // pred_check
      _
    $region35: #{gcn_layer_forward.1} parent=1 // pred_check_branch
      %34 = sbr.rel (0) target = $region37
    $region36: #{gcn_layer_forward.1} parent=1 // pred_region
      _
    $region37: #{gcn_layer_forward.1} parent=1 // pred_fallthru
      _
    // Predicated region
    $region38: #{gcn_layer_forward.1} parent=1 // pred_check
      _
    $region39: #{gcn_layer_forward.1} parent=1 // pred_check_branch
      %36 = sbr.rel (0) target = $region41
    $region40: #{gcn_layer_forward.1} parent=1 // pred_region
      _
    $region41: #{gcn_layer_forward.1} parent=1 // pred_fallthru
      _
    // Predicated region
    $region42: #{gcn_layer_forward.1} parent=1 // pred_check
      _
    $region43: #{gcn_layer_forward.1} parent=1 // pred_check_branch
      %38 = sbr.rel (0) target = $region45
    $region44: #{gcn_layer_forward.1} parent=1 // pred_region
      _
    $region45: #{gcn_layer_forward.1} parent=1 // pred_fallthru
      _
    %v39 = vld [vmem:[%s3] sm:$0xff]
    %v40 = vld [vmem:[%s3 + $0x8] sm:$0xff]
    %v41 = vld [vmem:[%s3 + $0x10] sm:$0xff]
    %v42 = vld [vmem:[%s3 + $0x18] sm:$0xff]
    %v43 = vld [vmem:[%s7] sm:$0xff]
    %v44 = vld [vmem:[%s7 + $0x8] sm:$0xff]
    %vm45 = vcmask 130048
    %v47 = vsel %vm45, %v39, 0
    %v50 = vsel %vm45, %v40, 0
    %v53 = vsel %vm45, %v41, 0
    %v56 = vsel %vm45, %v42, 0
    %58 = vmatprep.subr.mxu0 0.0
    %59 = vmatpush1.msra.mxu0 %v43
    %60 = vmatprep.subr.mxu0 0.0
    %61 = vmatpush1.msra.mxu0 %v44
    %62 = vmatprep.subr.mxu0 0.0
    %63 = vmatpush1.msra.mxu0 0.0
    %64 = vmatprep.subr.mxu0 0.0
    %65 = vmatpush1.msra.mxu0 0.0
    %66 = vmatprep.subr.mxu0 0.0
    %67 = vmatpush1.msra.mxu0 0.0
    %68 = vmatprep.subr.mxu0 0.0
    %69 = vmatpush1.msra.mxu0 0.0
    %70 = vmatprep.subr.mxu0 0.0
    %71 = vmatpush1.msra.mxu0 0.0
    %72 = vmatprep.subr.mxu0 0.0
    %73 = vmatpush1.msra.mxu0 0.0
    %74 = vmatprep.subr.mxu0 0.0
    %75 = vmatpush1.msra.mxu0 0.0
    %76 = vmatprep.subr.mxu0 0.0
    %77 = vmatpush1.msra.mxu0 0.0
    %78 = vmatprep.subr.mxu0 0.0
    %79 = vmatpush1.msra.mxu0 0.0
    %80 = vmatprep.subr.mxu0 0.0
    %81 = vmatpush1.msra.mxu0 0.0
    %82 = vmatprep.subr.mxu0 0.0
    %83 = vmatpush1.msra.mxu0 0.0
    %84 = vmatprep.subr.mxu0 0.0
    %85 = vmatpush1.msra.mxu0 0.0
    %86 = vmatprep.subr.mxu0 0.0
    %87 = vmatpush1.msra.mxu0 0.0
    %88 = vmatprep.subr.mxu0 0.0
    %89 = vmatpush1.msra.mxu0 0.0
    %90 = vmatprep.subr.mxu0 0.0
    %91 = vmatpush1.msra.mxu0 0.0
    %92 = vmatprep.subr.mxu0 0.0
    %93 = vmatpush1.msra.mxu0 0.0
    %94 = vmatprep.subr.mxu0 0.0
    %95 = vmatpush1.msra.mxu0 0.0
    %96 = vmatprep.subr.mxu0 0.0
    %97 = vmatpush1.msra.mxu0 0.0
    %98 = vmatprep.subr.mxu0 0.0
    %99 = vmatpush1.msra.mxu0 0.0
    %100 = vmatprep.subr.mxu0 0.0
    %101 = vmatpush1.msra.mxu0 0.0
    %102 = vmatprep.subr.mxu0 0.0
    %103 = vmatpush1.msra.mxu0 0.0
    %104 = vmatprep.subr.mxu0 0.0
    %105 = vmatpush1.msra.mxu0 0.0
    %106 = vmatprep.subr.mxu0 0.0
    %107 = vmatpush1.msra.mxu0 0.0
    %108 = vmatprep.subr.mxu0 0.0
    %109 = vmatpush1.msra.mxu0 0.0
    %110 = vmatprep.subr.mxu0 0.0
    %111 = vmatpush1.msra.mxu0 0.0
    %112 = vmatprep.subr.mxu0 0.0
    %113 = vmatpush1.msra.mxu0 0.0
    %114 = vmatprep.subr.mxu0 0.0
    %115 = vmatpush1.msra.mxu0 0.0
    %116 = vmatprep.subr.mxu0 0.0
    %117 = vmatpush1.msra.mxu0 0.0
    %118 = vmatprep.subr.mxu0 0.0
    %119 = vmatpush1.msra.mxu0 0.0
    %120 = vmatprep.subr.mxu0 0.0
    %121 = vmatpush1.msra.mxu0 0.0
    %122 = vmatprep.mubr.f32.mxu0 0.0
    %123 = vmatmul.mubr.f32.gmra.mrb[0].mxu0 %v47
    %v124 = vpop.f32.mrb[0].mxu0
    %v125 = vadd.f32 0.0, %v124
    %v126 = vpop.f32.mrb[0].mxu0
    %127 = vmatprep.mubr.f32.mxu0 0.0
    %128 = vmatmul.mubr.f32.gmra.mrb[0].mxu0 %v50
    %v129 = vpop.f32.mrb[0].mxu0
    %v130 = vadd.f32 0.0, %v129
    %v131 = vpop.f32.mrb[0].mxu0
    %132 = vmatprep.mubr.f32.mxu0 0.0
    %133 = vmatmul.mubr.f32.gmra.mrb[0].mxu0 %v53
    %v134 = vpop.f32.mrb[0].mxu0
    %v135 = vadd.f32 0.0, %v134
    %v136 = vpop.f32.mrb[0].mxu0
    %137 = vmatprep.mubr.f32.mxu0 0.0
    %138 = vmatmul.mubr.f32.gmra.mrb[0].mxu0 %v56
    %v139 = vpop.f32.mrb[0].mxu0
    %v140 = vadd.f32 0.0, %v139
    %v141 = vpop.f32.mrb[0].mxu0
    %142 = vdwg.mxu0
    %v143 = vxor.u32 %v125, 2147483648
    %v144 = vxor.u32 %v130, 2147483648
    %v145 = vxor.u32 %v135, 2147483648
    %v146 = vxor.u32 %v140, 2147483648
    %v147 = vmul.f32 %v143, 1.442695
    %v148 = vpow.pop %v147
    %v149 = vmul.f32 %v144, 1.442695
    %v150 = vpow.pop %v149
    %v151 = vmul.f32 %v145, 1.442695
    %v152 = vpow.pop %v151
    %v153 = vmul.f32 %v146, 1.442695
    %v154 = vpow.pop %v153
    %v155 = vadd.f32 %v148, 1.0
    %v156 = vadd.f32 %v150, 1.0
    %v157 = vadd.f32 %v152, 1.0
    %v158 = vadd.f32 %v154, 1.0
    %v159 = vrcp.pop %v155
    %v160 = vmul.f32 1.0, %v159
    %v161 = vrcp.pop %v156
    %v162 = vmul.f32 1.0, %v161
    %v163 = vrcp.pop %v157
    %v164 = vmul.f32 1.0, %v163
    %v165 = vrcp.pop %v158
    %v166 = vmul.f32 1.0, %v165
    %v167 = vmul.f32 %v125, %v160
    %v168 = vmul.f32 %v130, %v162
    %v169 = vmul.f32 %v135, %v164
    %v170 = vmul.f32 %v140, %v166
    %v171 = vld [vmem:[%s8] sm:$0xff]
    %v172 = vld [vmem:[%s8 + $0x8] sm:$0xff]
    %v173 = vld [vmem:[%s8 + $0x10] sm:$0xff]
    %v174 = vld [vmem:[%s8 + $0x18] sm:$0xff]
    %v175 = vld [vmem:[%s8 + $0x20] sm:$0xff]
    %v176 = vld [vmem:[%s8 + $0x28] sm:$0xff]
    %v177 = vld [vmem:[%s8 + $0x30] sm:$0xff]
    %v178 = vld [vmem:[%s8 + $0x38] sm:$0xff]
    %v179 = vld [vmem:[%s8 + $0x40] sm:$0xff]
    %v180 = vld [vmem:[%s8 + $0x48] sm:$0xff]
    %v181 = vld [vmem:[%s8 + $0x50] sm:$0xff]
    %v182 = vld [vmem:[%s8 + $0x58] sm:$0xff]
    %v183 = vld [vmem:[%s8 + $0x60] sm:$0xff]
    %v184 = vld [vmem:[%s8 + $0x68] sm:$0xff]
    %v185 = vld [vmem:[%s8 + $0x70] sm:$0xff]
    %v186 = vld [vmem:[%s8 + $0x78] sm:$0xff]
    %v187 = vld [vmem:[%s8 + $0x80] sm:$0xff]
    %v188 = vld [vmem:[%s8 + $0x88] sm:$0xff]
    %v189 = vld [vmem:[%s8 + $0x90] sm:$0xff]
    %v190 = vld [vmem:[%s8 + $0x98] sm:$0xff]
    %vm191 = vcmask 261120
    %v193 = vsel %vm191, %v167, 0
    %v196 = vsel %vm191, %v168, 0
    %v199 = vsel %vm191, %v169, 0
    %v202 = vsel %vm191, %v170, 0
    %204 = vmatprep.subr.mxu0 %v172
    %205 = vmatpush1.msra.mxu0 %v171
    %206 = vmatprep.subr.mxu0 %v177
    %207 = vmatpush1.msra.mxu0 %v176
    %208 = vmatprep.subr.mxu0 %v182
    %209 = vmatpush1.msra.mxu0 %v181
    %210 = vmatprep.subr.mxu0 %v187
    %211 = vmatpush1.msra.mxu0 %v186
    %212 = vmatprep.subr.mxu0 0.0
    %213 = vmatpush1.msra.mxu0 0.0
    %214 = vmatprep.subr.mxu0 0.0
    %215 = vmatpush1.msra.mxu0 0.0
    %216 = vmatprep.subr.mxu0 0.0
    %217 = vmatpush1.msra.mxu0 0.0
    %218 = vmatprep.subr.mxu0 0.0
    %219 = vmatpush1.msra.mxu0 0.0
    %220 = vmatprep.subr.mxu0 0.0
    %221 = vmatpush1.msra.mxu0 0.0
    %222 = vmatprep.subr.mxu0 0.0
    %223 = vmatpush1.msra.mxu0 0.0
    %224 = vmatprep.subr.mxu0 0.0
    %225 = vmatpush1.msra.mxu0 0.0
    %226 = vmatprep.subr.mxu0 0.0
    %227 = vmatpush1.msra.mxu0 0.0
    %228 = vmatprep.subr.mxu0 0.0
    %229 = vmatpush1.msra.mxu0 0.0
    %230 = vmatprep.subr.mxu0 0.0
    %231 = vmatpush1.msra.mxu0 0.0
    %232 = vmatprep.subr.mxu0 0.0
    %233 = vmatpush1.msra.mxu0 0.0
    %234 = vmatprep.subr.mxu0 0.0
    %235 = vmatpush1.msra.mxu0 0.0
    %236 = vmatprep.subr.mxu0 0.0
    %237 = vmatpush1.msra.mxu0 0.0
    %238 = vmatprep.subr.mxu0 0.0
    %239 = vmatpush1.msra.mxu0 0.0
    %240 = vmatprep.subr.mxu0 0.0
    %241 = vmatpush1.msra.mxu0 0.0
    %242 = vmatprep.subr.mxu0 0.0
    %243 = vmatpush1.msra.mxu0 0.0
    %244 = vmatprep.subr.mxu0 0.0
    %245 = vmatpush1.msra.mxu0 0.0
    %246 = vmatprep.subr.mxu0 0.0
    %247 = vmatpush1.msra.mxu0 0.0
    %248 = vmatprep.subr.mxu0 0.0
    %249 = vmatpush1.msra.mxu0 0.0
    %250 = vmatprep.subr.mxu0 0.0
    %251 = vmatpush1.msra.mxu0 0.0
    %252 = vmatprep.subr.mxu0 0.0
    %253 = vmatpush1.msra.mxu0 0.0
    %254 = vmatprep.subr.mxu0 0.0
    %255 = vmatpush1.msra.mxu0 0.0
    %256 = vmatprep.subr.mxu0 0.0
    %257 = vmatpush1.msra.mxu0 0.0
    %258 = vmatprep.subr.mxu0 0.0
    %259 = vmatpush1.msra.mxu0 0.0
    %260 = vmatprep.subr.mxu0 0.0
    %261 = vmatpush1.msra.mxu0 0.0
    %262 = vmatprep.subr.mxu0 0.0
    %263 = vmatpush1.msra.mxu0 0.0
    %264 = vmatprep.subr.mxu0 0.0
    %265 = vmatpush1.msra.mxu0 0.0
    %266 = vmatprep.subr.mxu0 0.0
    %267 = vmatpush1.msra.mxu0 0.0
    %268 = vmatprep.mubr.f32.mxu0 0.0
    %269 = vmatmul.mubr.f32.gmra.mrb[0].mxu0 %v193
    %v270 = vpop.f32.mrb[0].mxu0
    %v271 = vadd.f32 0.0, %v270
    %v272 = vpop.f32.mrb[0].mxu0
    %v273 = vadd.f32 0.0, %v272
    %274 = vmatprep.mubr.f32.mxu0 0.0
    %275 = vmatmul.mubr.f32.gmra.mrb[0].mxu0 %v196
    %v276 = vpop.f32.mrb[0].mxu0
    %v277 = vadd.f32 0.0, %v276
    %v278 = vpop.f32.mrb[0].mxu0
    %v279 = vadd.f32 0.0, %v278
    %280 = vmatprep.mubr.f32.mxu0 0.0
    %281 = vmatmul.mubr.f32.gmra.mrb[0].mxu0 %v199
    %v282 = vpop.f32.mrb[0].mxu0
    %v283 = vadd.f32 0.0, %v282
    %v284 = vpop.f32.mrb[0].mxu0
    %v285 = vadd.f32 0.0, %v284
    %286 = vmatprep.mubr.f32.mxu0 0.0
    %287 = vmatmul.mubr.f32.gmra.mrb[0].mxu0 %v202
    %v288 = vpop.f32.mrb[0].mxu0
    %v289 = vadd.f32 0.0, %v288
    %v290 = vpop.f32.mrb[0].mxu0
    %v291 = vadd.f32 0.0, %v290
    %292 = vdwg.mxu0
    %293 = vmatprep.subr.mxu0 %v174
    %294 = vmatpush1.msra.mxu0 %v173
    %295 = vmatprep.subr.mxu0 %v179
    %296 = vmatpush1.msra.mxu0 %v178
    %297 = vmatprep.subr.mxu0 %v184
    %298 = vmatpush1.msra.mxu0 %v183
    %299 = vmatprep.subr.mxu0 %v189
    %300 = vmatpush1.msra.mxu0 %v188
    %301 = vmatprep.subr.mxu0 0.0
    %302 = vmatpush1.msra.mxu0 0.0
    %303 = vmatprep.subr.mxu0 0.0
    %304 = vmatpush1.msra.mxu0 0.0
    %305 = vmatprep.subr.mxu0 0.0
    %306 = vmatpush1.msra.mxu0 0.0
    %307 = vmatprep.subr.mxu0 0.0
    %308 = vmatpush1.msra.mxu0 0.0
    %309 = vmatprep.subr.mxu0 0.0
    %310 = vmatpush1.msra.mxu0 0.0
    %311 = vmatprep.subr.mxu0 0.0
    %312 = vmatpush1.msra.mxu0 0.0
    %313 = vmatprep.subr.mxu0 0.0
    %314 = vmatpush1.msra.mxu0 0.0
    %315 = vmatprep.subr.mxu0 0.0
    %316 = vmatpush1.msra.mxu0 0.0
    %317 = vmatprep.subr.mxu0 0.0
    %318 = vmatpush1.msra.mxu0 0.0
    %319 = vmatprep.subr.mxu0 0.0
    %320 = vmatpush1.msra.mxu0 0.0
    %321 = vmatprep.subr.mxu0 0.0
    %322 = vmatpush1.msra.mxu0 0.0
    %323 = vmatprep.subr.mxu0 0.0
    %324 = vmatpush1.msra.mxu0 0.0
    %325 = vmatprep.subr.mxu0 0.0
    %326 = vmatpush1.msra.mxu0 0.0
    %327 = vmatprep.subr.mxu0 0.0
    %328 = vmatpush1.msra.mxu0 0.0
    %329 = vmatprep.subr.mxu0 0.0
    %330 = vmatpush1.msra.mxu0 0.0
    %331 = vmatprep.subr.mxu0 0.0
    %332 = vmatpush1.msra.mxu0 0.0
    %333 = vmatprep.subr.mxu0 0.0
    %334 = vmatpush1.msra.mxu0 0.0
    %335 = vmatprep.subr.mxu0 0.0
    %336 = vmatpush1.msra.mxu0 0.0
    %337 = vmatprep.subr.mxu0 0.0
    %338 = vmatpush1.msra.mxu0 0.0
    %339 = vmatprep.subr.mxu0 0.0
    %340 = vmatpush1.msra.mxu0 0.0
    %341 = vmatprep.subr.mxu0 0.0
    %342 = vmatpush1.msra.mxu0 0.0
    %343 = vmatprep.subr.mxu0 0.0
    %344 = vmatpush1.msra.mxu0 0.0
    %345 = vmatprep.subr.mxu0 0.0
    %346 = vmatpush1.msra.mxu0 0.0
    %347 = vmatprep.subr.mxu0 0.0
    %348 = vmatpush1.msra.mxu0 0.0
    %349 = vmatprep.subr.mxu0 0.0
    %350 = vmatpush1.msra.mxu0 0.0
    %351 = vmatprep.subr.mxu0 0.0
    %352 = vmatpush1.msra.mxu0 0.0
    %353 = vmatprep.subr.mxu0 0.0
    %354 = vmatpush1.msra.mxu0 0.0
    %355 = vmatprep.subr.mxu0 0.0
    %356 = vmatpush1.msra.mxu0 0.0
    %357 = vmatprep.mubr.f32.mxu0 0.0
    %358 = vmatmul.mubr.f32.gmra.mrb[0].mxu0 %v193
    %v359 = vpop.f32.mrb[0].mxu0
    %v360 = vadd.f32 0.0, %v359
    %v361 = vpop.f32.mrb[0].mxu0
    %v362 = vadd.f32 0.0, %v361
    %363 = vmatprep.mubr.f32.mxu0 0.0
    %364 = vmatmul.mubr.f32.gmra.mrb[0].mxu0 %v196
    %v365 = vpop.f32.mrb[0].mxu0
    %v366 = vadd.f32 0.0, %v365
    %v367 = vpop.f32.mrb[0].mxu0
    %v368 = vadd.f32 0.0, %v367
    %369 = vmatprep.mubr.f32.mxu0 0.0
    %370 = vmatmul.mubr.f32.gmra.mrb[0].mxu0 %v199
    %v371 = vpop.f32.mrb[0].mxu0
    %v372 = vadd.f32 0.0, %v371
    %v373 = vpop.f32.mrb[0].mxu0
    %v374 = vadd.f32 0.0, %v373
    %375 = vmatprep.mubr.f32.mxu0 0.0
    %376 = vmatmul.mubr.f32.gmra.mrb[0].mxu0 %v202
    %v377 = vpop.f32.mrb[0].mxu0
    %v378 = vadd.f32 0.0, %v377
    %v379 = vpop.f32.mrb[0].mxu0
    %v380 = vadd.f32 0.0, %v379
    %381 = vdwg.mxu0
    %382 = vmatprep.subr.mxu0 0.0
    %383 = vmatpush1.msra.mxu0 %v175
    %384 = vmatprep.subr.mxu0 0.0
    %385 = vmatpush1.msra.mxu0 %v180
    %386 = vmatprep.subr.mxu0 0.0
    %387 = vmatpush1.msra.mxu0 %v185
    %388 = vmatprep.subr.mxu0 0.0
    %389 = vmatpush1.msra.mxu0 %v190
    %390 = vmatprep.subr.mxu0 0.0
    %391 = vmatpush1.msra.mxu0 0.0
    %392 = vmatprep.subr.mxu0 0.0
    %393 = vmatpush1.msra.mxu0 0.0
    %394 = vmatprep.subr.mxu0 0.0
    %395 = vmatpush1.msra.mxu0 0.0
    %396 = vmatprep.subr.mxu0 0.0
    %397 = vmatpush1.msra.mxu0 0.0
    %398 = vmatprep.subr.mxu0 0.0
    %399 = vmatpush1.msra.mxu0 0.0
    %400 = vmatprep.subr.mxu0 0.0
    %401 = vmatpush1.msra.mxu0 0.0
    %402 = vmatprep.subr.mxu0 0.0
    %403 = vmatpush1.msra.mxu0 0.0
    %404 = vmatprep.subr.mxu0 0.0
    %405 = vmatpush1.msra.mxu0 0.0
    %406 = vmatprep.subr.mxu0 0.0
    %407 = vmatpush1.msra.mxu0 0.0
    %408 = vmatprep.subr.mxu0 0.0
    %409 = vmatpush1.msra.mxu0 0.0
    %410 = vmatprep.subr.mxu0 0.0
    %411 = vmatpush1.msra.mxu0 0.0
    %412 = vmatprep.subr.mxu0 0.0
    %413 = vmatpush1.msra.mxu0 0.0
    %414 = vmatprep.subr.mxu0 0.0
    %415 = vmatpush1.msra.mxu0 0.0
    %416 = vmatprep.subr.mxu0 0.0
    %417 = vmatpush1.msra.mxu0 0.0
    %418 = vmatprep.subr.mxu0 0.0
    %419 = vmatpush1.msra.mxu0 0.0
    %420 = vmatprep.subr.mxu0 0.0
    %421 = vmatpush1.msra.mxu0 0.0
    %422 = vmatprep.subr.mxu0 0.0
    %423 = vmatpush1.msra.mxu0 0.0
    %424 = vmatprep.subr.mxu0 0.0
    %425 = vmatpush1.msra.mxu0 0.0
    %426 = vmatprep.subr.mxu0 0.0
    %427 = vmatpush1.msra.mxu0 0.0
    %428 = vmatprep.subr.mxu0 0.0
    %429 = vmatpush1.msra.mxu0 0.0
    %430 = vmatprep.subr.mxu0 0.0
    %431 = vmatpush1.msra.mxu0 0.0
    %432 = vmatprep.subr.mxu0 0.0
    %433 = vmatpush1.msra.mxu0 0.0
    %434 = vmatprep.subr.mxu0 0.0
    %435 = vmatpush1.msra.mxu0 0.0
    %436 = vmatprep.subr.mxu0 0.0
    %437 = vmatpush1.msra.mxu0 0.0
    %438 = vmatprep.subr.mxu0 0.0
    %439 = vmatpush1.msra.mxu0 0.0
    %440 = vmatprep.subr.mxu0 0.0
    %441 = vmatpush1.msra.mxu0 0.0
    %442 = vmatprep.subr.mxu0 0.0
    %443 = vmatpush1.msra.mxu0 0.0
    %444 = vmatprep.subr.mxu0 0.0
    %445 = vmatpush1.msra.mxu0 0.0
    %446 = vmatprep.mubr.f32.mxu0 0.0
    %447 = vmatmul.mubr.f32.gmra.mrb[0].mxu0 %v193
    %v448 = vpop.f32.mrb[0].mxu0
    %v449 = vadd.f32 0.0, %v448
    %v450 = vpop.f32.mrb[0].mxu0
    %451 = vmatprep.mubr.f32.mxu0 0.0
    %452 = vmatmul.mubr.f32.gmra.mrb[0].mxu0 %v196
    %v453 = vpop.f32.mrb[0].mxu0
    %v454 = vadd.f32 0.0, %v453
    %v455 = vpop.f32.mrb[0].mxu0
    %456 = vmatprep.mubr.f32.mxu0 0.0
    %457 = vmatmul.mubr.f32.gmra.mrb[0].mxu0 %v199
    %v458 = vpop.f32.mrb[0].mxu0
    %v459 = vadd.f32 0.0, %v458
    %v460 = vpop.f32.mrb[0].mxu0
    %461 = vmatprep.mubr.f32.mxu0 0.0
    %462 = vmatmul.mubr.f32.gmra.mrb[0].mxu0 %v202
    %v463 = vpop.f32.mrb[0].mxu0
    %v464 = vadd.f32 0.0, %v463
    %v465 = vpop.f32.mrb[0].mxu0
    %466 = vdwg.mxu0
    %v467 = vld [vmem:[%s4] sm:$0xff]
    %v468 = vld [vmem:[%s4 + $0x8] sm:$0xff]
    %v469 = vld [vmem:[%s5] sm:$0xff]
    %v470 = vld [vmem:[%s5 + $0x8] sm:$0xff]
    %v471 = vld [vmem:[%s5 + $0x10] sm:$0xff]
    %v472 = vld [vmem:[%s5 + $0x18] sm:$0xff]
    %v473 = vld [vmem:[%s5 + $0x20] sm:$0xff]
    %v474 = vld [vmem:[%s5 + $0x28] sm:$0xff]
    %v475 = vld [vmem:[%s5 + $0x30] sm:$0xff]
    %v476 = vld [vmem:[%s5 + $0x38] sm:$0xff]
    %v477 = vld [vmem:[%s5 + $0x40] sm:$0xff]
    %v478 = vld [vmem:[%s5 + $0x48] sm:$0xff]
    %v479 = vld [vmem:[%s5 + $0x50] sm:$0xff]
    %v480 = vld [vmem:[%s5 + $0x58] sm:$0xff]
    %v481 = vld [vmem:[%s5 + $0x60] sm:$0xff]
    %v482 = vld [vmem:[%s5 + $0x68] sm:$0xff]
    %v483 = vld [vmem:[%s5 + $0x70] sm:$0xff]
    %v484 = vld [vmem:[%s5 + $0x78] sm:$0xff]
    %v485 = vld [vmem:[%s5 + $0x80] sm:$0xff]
    %v486 = vld [vmem:[%s5 + $0x88] sm:$0xff]
    %v487 = vld [vmem:[%s5 + $0x90] sm:$0xff]
    %v488 = vld [vmem:[%s5 + $0x98] sm:$0xff]
    %v490 = vsel %vm191, %v467, 0
    %v493 = vsel %vm191, %v468, 0
    %495 = vmatprep.subr.mxu0 %v470
    %496 = vmatpush1.msra.mxu0 %v469
    %497 = vmatprep.subr.mxu0 %v475
    %498 = vmatpush1.msra.mxu0 %v474
    %499 = vmatprep.subr.mxu0 %v480
    %500 = vmatpush1.msra.mxu0 %v479
    %501 = vmatprep.subr.mxu0 %v485
    %502 = vmatpush1.msra.mxu0 %v484
    %503 = vmatprep.subr.mxu0 0.0
    %504 = vmatpush1.msra.mxu0 0.0
    %505 = vmatprep.subr.mxu0 0.0
    %506 = vmatpush1.msra.mxu0 0.0
    %507 = vmatprep.subr.mxu0 0.0
    %508 = vmatpush1.msra.mxu0 0.0
    %509 = vmatprep.subr.mxu0 0.0
    %510 = vmatpush1.msra.mxu0 0.0
    %511 = vmatprep.subr.mxu0 0.0
    %512 = vmatpush1.msra.mxu0 0.0
    %513 = vmatprep.subr.mxu0 0.0
    %514 = vmatpush1.msra.mxu0 0.0
    %515 = vmatprep.subr.mxu0 0.0
    %516 = vmatpush1.msra.mxu0 0.0
    %517 = vmatprep.subr.mxu0 0.0
    %518 = vmatpush1.msra.mxu0 0.0
    %519 = vmatprep.subr.mxu0 0.0
    %520 = vmatpush1.msra.mxu0 0.0
    %521 = vmatprep.subr.mxu0 0.0
    %522 = vmatpush1.msra.mxu0 0.0
    %523 = vmatprep.subr.mxu0 0.0
    %524 = vmatpush1.msra.mxu0 0.0
    %525 = vmatprep.subr.mxu0 0.0
    %526 = vmatpush1.msra.mxu0 0.0
    %527 = vmatprep.subr.mxu0 0.0
    %528 = vmatpush1.msra.mxu0 0.0
    %529 = vmatprep.subr.mxu0 0.0
    %530 = vmatpush1.msra.mxu0 0.0
    %531 = vmatprep.subr.mxu0 0.0
    %532 = vmatpush1.msra.mxu0 0.0
    %533 = vmatprep.subr.mxu0 0.0
    %534 = vmatpush1.msra.mxu0 0.0
    %535 = vmatprep.subr.mxu0 0.0
    %536 = vmatpush1.msra.mxu0 0.0
    %537 = vmatprep.subr.mxu0 0.0
    %538 = vmatpush1.msra.mxu0 0.0
    %539 = vmatprep.subr.mxu0 0.0
    %540 = vmatpush1.msra.mxu0 0.0
    %541 = vmatprep.subr.mxu0 0.0
    %542 = vmatpush1.msra.mxu0 0.0
    %543 = vmatprep.subr.mxu0 0.0
    %544 = vmatpush1.msra.mxu0 0.0
    %545 = vmatprep.subr.mxu0 0.0
    %546 = vmatpush1.msra.mxu0 0.0
    %547 = vmatprep.subr.mxu0 0.0
    %548 = vmatpush1.msra.mxu0 0.0
    %549 = vmatprep.subr.mxu0 0.0
    %550 = vmatpush1.msra.mxu0 0.0
    %551 = vmatprep.subr.mxu0 0.0
    %552 = vmatpush1.msra.mxu0 0.0
    %553 = vmatprep.subr.mxu0 0.0
    %554 = vmatpush1.msra.mxu0 0.0
    %555 = vmatprep.subr.mxu0 0.0
    %556 = vmatpush1.msra.mxu0 0.0
    %557 = vmatprep.subr.mxu0 0.0
    %558 = vmatpush1.msra.mxu0 0.0
    %559 = vmatprep.mubr.f32.mxu0 0.0
    %560 = vmatmul.mubr.f32.gmra.mrb[0].mxu0 %v490
    %v561 = vpop.f32.mrb[0].mxu0
    %v562 = vadd.f32 0.0, %v561
    %v563 = vpop.f32.mrb[0].mxu0
    %v564 = vadd.f32 0.0, %v563
    %565 = vmatprep.mubr.f32.mxu0 0.0
    %566 = vmatmul.mubr.f32.gmra.mrb[0].mxu0 %v493
    %v567 = vpop.f32.mrb[0].mxu0
    %v568 = vadd.f32 0.0, %v567
    %v569 = vpop.f32.mrb[0].mxu0
    %v570 = vadd.f32 0.0, %v569
    %571 = vdwg.mxu0
    %572 = vmatprep.subr.mxu0 %v472
    %573 = vmatpush1.msra.mxu0 %v471
    %574 = vmatprep.subr.mxu0 %v477
    %575 = vmatpush1.msra.mxu0 %v476
    %576 = vmatprep.subr.mxu0 %v482
    %577 = vmatpush1.msra.mxu0 %v481
    %578 = vmatprep.subr.mxu0 %v487
    %579 = vmatpush1.msra.mxu0 %v486
    %580 = vmatprep.subr.mxu0 0.0
    %581 = vmatpush1.msra.mxu0 0.0
    %582 = vmatprep.subr.mxu0 0.0
    %583 = vmatpush1.msra.mxu0 0.0
    %584 = vmatprep.subr.mxu0 0.0
    %585 = vmatpush1.msra.mxu0 0.0
    %586 = vmatprep.subr.mxu0 0.0
    %587 = vmatpush1.msra.mxu0 0.0
    %588 = vmatprep.subr.mxu0 0.0
    %589 = vmatpush1.msra.mxu0 0.0
    %590 = vmatprep.subr.mxu0 0.0
    %591 = vmatpush1.msra.mxu0 0.0
    %592 = vmatprep.subr.mxu0 0.0
    %593 = vmatpush1.msra.mxu0 0.0
    %594 = vmatprep.subr.mxu0 0.0
    %595 = vmatpush1.msra.mxu0 0.0
    %596 = vmatprep.subr.mxu0 0.0
    %597 = vmatpush1.msra.mxu0 0.0
    %598 = vmatprep.subr.mxu0 0.0
    %599 = vmatpush1.msra.mxu0 0.0
    %600 = vmatprep.subr.mxu0 0.0
    %601 = vmatpush1.msra.mxu0 0.0
    %602 = vmatprep.subr.mxu0 0.0
    %603 = vmatpush1.msra.mxu0 0.0
    %604 = vmatprep.subr.mxu0 0.0
    %605 = vmatpush1.msra.mxu0 0.0
    %606 = vmatprep.subr.mxu0 0.0
    %607 = vmatpush1.msra.mxu0 0.0
    %608 = vmatprep.subr.mxu0 0.0
    %609 = vmatpush1.msra.mxu0 0.0
    %610 = vmatprep.subr.mxu0 0.0
    %611 = vmatpush1.msra.mxu0 0.0
    %612 = vmatprep.subr.mxu0 0.0
    %613 = vmatpush1.msra.mxu0 0.0
    %614 = vmatprep.subr.mxu0 0.0
    %615 = vmatpush1.msra.mxu0 0.0
    %616 = vmatprep.subr.mxu0 0.0
    %617 = vmatpush1.msra.mxu0 0.0
    %618 = vmatprep.subr.mxu0 0.0
    %619 = vmatpush1.msra.mxu0 0.0
    %620 = vmatprep.subr.mxu0 0.0
    %621 = vmatpush1.msra.mxu0 0.0
    %622 = vmatprep.subr.mxu0 0.0
    %623 = vmatpush1.msra.mxu0 0.0
    %624 = vmatprep.subr.mxu0 0.0
    %625 = vmatpush1.msra.mxu0 0.0
    %626 = vmatprep.subr.mxu0 0.0
    %627 = vmatpush1.msra.mxu0 0.0
    %628 = vmatprep.subr.mxu0 0.0
    %629 = vmatpush1.msra.mxu0 0.0
    %630 = vmatprep.subr.mxu0 0.0
    %631 = vmatpush1.msra.mxu0 0.0
    %632 = vmatprep.subr.mxu0 0.0
    %633 = vmatpush1.msra.mxu0 0.0
    %634 = vmatprep.subr.mxu0 0.0
    %635 = vmatpush1.msra.mxu0 0.0
    %636 = vmatprep.mubr.f32.mxu0 0.0
    %637 = vmatmul.mubr.f32.gmra.mrb[0].mxu0 %v490
    %v638 = vpop.f32.mrb[0].mxu0
    %v639 = vadd.f32 0.0, %v638
    %v640 = vpop.f32.mrb[0].mxu0
    %v641 = vadd.f32 0.0, %v640
    %642 = vmatprep.mubr.f32.mxu0 0.0
    %643 = vmatmul.mubr.f32.gmra.mrb[0].mxu0 %v493
    %v644 = vpop.f32.mrb[0].mxu0
    %v645 = vadd.f32 0.0, %v644
    %v646 = vpop.f32.mrb[0].mxu0
    %v647 = vadd.f32 0.0, %v646
    %648 = vdwg.mxu0
    %649 = vmatprep.subr.mxu0 0.0
    %650 = vmatpush1.msra.mxu0 %v473
    %651 = vmatprep.subr.mxu0 0.0
    %652 = vmatpush1.msra.mxu0 %v478
    %653 = vmatprep.subr.mxu0 0.0
    %654 = vmatpush1.msra.mxu0 %v483
    %655 = vmatprep.subr.mxu0 0.0
    %656 = vmatpush1.msra.mxu0 %v488
    %657 = vmatprep.subr.mxu0 0.0
    %658 = vmatpush1.msra.mxu0 0.0
    %659 = vmatprep.subr.mxu0 0.0
    %660 = vmatpush1.msra.mxu0 0.0
    %661 = vmatprep.subr.mxu0 0.0
    %662 = vmatpush1.msra.mxu0 0.0
    %663 = vmatprep.subr.mxu0 0.0
    %664 = vmatpush1.msra.mxu0 0.0
    %665 = vmatprep.subr.mxu0 0.0
    %666 = vmatpush1.msra.mxu0 0.0
    %667 = vmatprep.subr.mxu0 0.0
    %668 = vmatpush1.msra.mxu0 0.0
    %669 = vmatprep.subr.mxu0 0.0
    %670 = vmatpush1.msra.mxu0 0.0
    %671 = vmatprep.subr.mxu0 0.0
    %672 = vmatpush1.msra.mxu0 0.0
    %673 = vmatprep.subr.mxu0 0.0
    %674 = vmatpush1.msra.mxu0 0.0
    %675 = vmatprep.subr.mxu0 0.0
    %676 = vmatpush1.msra.mxu0 0.0
    %677 = vmatprep.subr.mxu0 0.0
    %678 = vmatpush1.msra.mxu0 0.0
    %679 = vmatprep.subr.mxu0 0.0
    %680 = vmatpush1.msra.mxu0 0.0
    %681 = vmatprep.subr.mxu0 0.0
    %682 = vmatpush1.msra.mxu0 0.0
    %683 = vmatprep.subr.mxu0 0.0
    %684 = vmatpush1.msra.mxu0 0.0
    %685 = vmatprep.subr.mxu0 0.0
    %686 = vmatpush1.msra.mxu0 0.0
    %687 = vmatprep.subr.mxu0 0.0
    %688 = vmatpush1.msra.mxu0 0.0
    %689 = vmatprep.subr.mxu0 0.0
    %690 = vmatpush1.msra.mxu0 0.0
    %691 = vmatprep.subr.mxu0 0.0
    %692 = vmatpush1.msra.mxu0 0.0
    %693 = vmatprep.subr.mxu0 0.0
    %694 = vmatpush1.msra.mxu0 0.0
    %695 = vmatprep.subr.mxu0 0.0
    %696 = vmatpush1.msra.mxu0 0.0
    %697 = vmatprep.subr.mxu0 0.0
    %698 = vmatpush1.msra.mxu0 0.0
    %699 = vmatprep.subr.mxu0 0.0
    %700 = vmatpush1.msra.mxu0 0.0
    %701 = vmatprep.subr.mxu0 0.0
    %702 = vmatpush1.msra.mxu0 0.0
    %703 = vmatprep.subr.mxu0 0.0
    %704 = vmatpush1.msra.mxu0 0.0
    %705 = vmatprep.subr.mxu0 0.0
    %706 = vmatpush1.msra.mxu0 0.0
    %707 = vmatprep.subr.mxu0 0.0
    %708 = vmatpush1.msra.mxu0 0.0
    %709 = vmatprep.subr.mxu0 0.0
    %710 = vmatpush1.msra.mxu0 0.0
    %711 = vmatprep.subr.mxu0 0.0
    %712 = vmatpush1.msra.mxu0 0.0
    %713 = vmatprep.mubr.f32.mxu0 0.0
    %714 = vmatmul.mubr.f32.gmra.mrb[0].mxu0 %v490
    %v715 = vpop.f32.mrb[0].mxu0
    %v716 = vadd.f32 0.0, %v715
    %v717 = vpop.f32.mrb[0].mxu0
    %718 = vmatprep.mubr.f32.mxu0 0.0
    %719 = vmatmul.mubr.f32.gmra.mrb[0].mxu0 %v493
    %v720 = vpop.f32.mrb[0].mxu0
    %v721 = vadd.f32 0.0, %v720
    %v722 = vpop.f32.mrb[0].mxu0
    %723 = vdwg.mxu0
    %v724 = vld [vmem:[%s0] sm:$0xff]
    %v725 = vld [vmem:[%s0 + $0x8] sm:$0xff]
    %v726 = vld [vmem:[%s0 + $0x10] sm:$0xff]
    %v727 = vld [vmem:[%s0 + $0x18] sm:$0xff]
    %v729 = vsel %vm45, %v724, 0
    %v732 = vsel %vm45, %v725, 0
    %v735 = vsel %vm45, %v726, 0
    %v738 = vsel %vm45, %v727, 0
    %740 = vmatprep.subr.mxu0 %v564
    %741 = vmatpush1.msra.mxu0 %v562
    %742 = vmatprep.subr.mxu0 %v570
    %743 = vmatpush1.msra.mxu0 %v568
    %744 = vmatprep.subr.mxu0 0.0
    %745 = vmatpush1.msra.mxu0 0.0
    %746 = vmatprep.subr.mxu0 0.0
    %747 = vmatpush1.msra.mxu0 0.0
    %748 = vmatprep.subr.mxu0 0.0
    %749 = vmatpush1.msra.mxu0 0.0
    %750 = vmatprep.subr.mxu0 0.0
    %751 = vmatpush1.msra.mxu0 0.0
    %752 = vmatprep.subr.mxu0 0.0
    %753 = vmatpush1.msra.mxu0 0.0
    %754 = vmatprep.subr.mxu0 0.0
    %755 = vmatpush1.msra.mxu0 0.0
    %756 = vmatprep.subr.mxu0 0.0
    %757 = vmatpush1.msra.mxu0 0.0
    %758 = vmatprep.subr.mxu0 0.0
    %759 = vmatpush1.msra.mxu0 0.0
    %760 = vmatprep.subr.mxu0 0.0
    %761 = vmatpush1.msra.mxu0 0.0
    %762 = vmatprep.subr.mxu0 0.0
    %763 = vmatpush1.msra.mxu0 0.0
    %764 = vmatprep.subr.mxu0 0.0
    %765 = vmatpush1.msra.mxu0 0.0
    %766 = vmatprep.subr.mxu0 0.0
    %767 = vmatpush1.msra.mxu0 0.0
    %768 = vmatprep.subr.mxu0 0.0
    %769 = vmatpush1.msra.mxu0 0.0
    %770 = vmatprep.subr.mxu0 0.0
    %771 = vmatpush1.msra.mxu0 0.0
    %772 = vmatprep.subr.mxu0 0.0
    %773 = vmatpush1.msra.mxu0 0.0
    %774 = vmatprep.subr.mxu0 0.0
    %775 = vmatpush1.msra.mxu0 0.0
    %776 = vmatprep.subr.mxu0 0.0
    %777 = vmatpush1.msra.mxu0 0.0
    %778 = vmatprep.subr.mxu0 0.0
    %779 = vmatpush1.msra.mxu0 0.0
    %780 = vmatprep.subr.mxu0 0.0
    %781 = vmatpush1.msra.mxu0 0.0
    %782 = vmatprep.subr.mxu0 0.0
    %783 = vmatpush1.msra.mxu0 0.0
    %784 = vmatprep.subr.mxu0 0.0
    %785 = vmatpush1.msra.mxu0 0.0
    %786 = vmatprep.subr.mxu0 0.0
    %787 = vmatpush1.msra.mxu0 0.0
    %788 = vmatprep.subr.mxu0 0.0
    %789 = vmatpush1.msra.mxu0 0.0
    %790 = vmatprep.subr.mxu0 0.0
    %791 = vmatpush1.msra.mxu0 0.0
    %792 = vmatprep.subr.mxu0 0.0
    %793 = vmatpush1.msra.mxu0 0.0
    %794 = vmatprep.subr.mxu0 0.0
    %795 = vmatpush1.msra.mxu0 0.0
    %796 = vmatprep.subr.mxu0 0.0
    %797 = vmatpush1.msra.mxu0 0.0
    %798 = vmatprep.subr.mxu0 0.0
    %799 = vmatpush1.msra.mxu0 0.0
    %800 = vmatprep.subr.mxu0 0.0
    %801 = vmatpush1.msra.mxu0 0.0
    %802 = vmatprep.subr.mxu0 0.0
    %803 = vmatpush1.msra.mxu0 0.0
    %804 = vmatprep.mubr.f32.mxu0 0.0
    %805 = vmatmul.mubr.f32.gmra.mrb[0].mxu0 %v729
    %v806 = vpop.f32.mrb[0].mxu0
    %v807 = vadd.f32 0.0, %v806
    %v808 = vpop.f32.mrb[0].mxu0
    %v809 = vadd.f32 0.0, %v808
    %810 = vmatprep.mubr.f32.mxu0 0.0
    %811 = vmatmul.mubr.f32.gmra.mrb[0].mxu0 %v732
    %v812 = vpop.f32.mrb[0].mxu0
    %v813 = vadd.f32 0.0, %v812
    %v814 = vpop.f32.mrb[0].mxu0
    %v815 = vadd.f32 0.0, %v814
    %816 = vmatprep.mubr.f32.mxu0 0.0
    %817 = vmatmul.mubr.f32.gmra.mrb[0].mxu0 %v735
    %v818 = vpop.f32.mrb[0].mxu0
    %v819 = vadd.f32 0.0, %v818
    %v820 = vpop.f32.mrb[0].mxu0
    %v821 = vadd.f32 0.0, %v820
    %822 = vmatprep.mubr.f32.mxu0 0.0
    %823 = vmatmul.mubr.f32.gmra.mrb[0].mxu0 %v738
    %v824 = vpop.f32.mrb[0].mxu0
    %v825 = vadd.f32 0.0, %v824
    %v826 = vpop.f32.mrb[0].mxu0
    %v827 = vadd.f32 0.0, %v826
    %828 = vdwg.mxu0
    %829 = vmatprep.subr.mxu0 %v641
    %830 = vmatpush1.msra.mxu0 %v639
    %831 = vmatprep.subr.mxu0 %v647
    %832 = vmatpush1.msra.mxu0 %v645
    %833 = vmatprep.subr.mxu0 0.0
    %834 = vmatpush1.msra.mxu0 0.0
    %835 = vmatprep.subr.mxu0 0.0
    %836 = vmatpush1.msra.mxu0 0.0
    %837 = vmatprep.subr.mxu0 0.0
    %838 = vmatpush1.msra.mxu0 0.0
    %839 = vmatprep.subr.mxu0 0.0
    %840 = vmatpush1.msra.mxu0 0.0
    %841 = vmatprep.subr.mxu0 0.0
    %842 = vmatpush1.msra.mxu0 0.0
    %843 = vmatprep.subr.mxu0 0.0
    %844 = vmatpush1.msra.mxu0 0.0
    %845 = vmatprep.subr.mxu0 0.0
    %846 = vmatpush1.msra.mxu0 0.0
    %847 = vmatprep.subr.mxu0 0.0
    %848 = vmatpush1.msra.mxu0 0.0
    %849 = vmatprep.subr.mxu0 0.0
    %850 = vmatpush1.msra.mxu0 0.0
    %851 = vmatprep.subr.mxu0 0.0
    %852 = vmatpush1.msra.mxu0 0.0
    %853 = vmatprep.subr.mxu0 0.0
    %854 = vmatpush1.msra.mxu0 0.0
    %855 = vmatprep.subr.mxu0 0.0
    %856 = vmatpush1.msra.mxu0 0.0
    %857 = vmatprep.subr.mxu0 0.0
    %858 = vmatpush1.msra.mxu0 0.0
    %859 = vmatprep.subr.mxu0 0.0
    %860 = vmatpush1.msra.mxu0 0.0
    %861 = vmatprep.subr.mxu0 0.0
    %862 = vmatpush1.msra.mxu0 0.0
    %863 = vmatprep.subr.mxu0 0.0
    %864 = vmatpush1.msra.mxu0 0.0
    %865 = vmatprep.subr.mxu0 0.0
    %866 = vmatpush1.msra.mxu0 0.0
    %867 = vmatprep.subr.mxu0 0.0
    %868 = vmatpush1.msra.mxu0 0.0
    %869 = vmatprep.subr.mxu0 0.0
    %870 = vmatpush1.msra.mxu0 0.0
    %871 = vmatprep.subr.mxu0 0.0
    %872 = vmatpush1.msra.mxu0 0.0
    %873 = vmatprep.subr.mxu0 0.0
    %874 = vmatpush1.msra.mxu0 0.0
    %875 = vmatprep.subr.mxu0 0.0
    %876 = vmatpush1.msra.mxu0 0.0
    %877 = vmatprep.subr.mxu0 0.0
    %878 = vmatpush1.msra.mxu0 0.0
    %879 = vmatprep.subr.mxu0 0.0
    %880 = vmatpush1.msra.mxu0 0.0
    %881 = vmatprep.subr.mxu0 0.0
    %882 = vmatpush1.msra.mxu0 0.0
    %883 = vmatprep.subr.mxu0 0.0
    %884 = vmatpush1.msra.mxu0 0.0
    %885 = vmatprep.subr.mxu0 0.0
    %886 = vmatpush1.msra.mxu0 0.0
    %887 = vmatprep.subr.mxu0 0.0
    %888 = vmatpush1.msra.mxu0 0.0
    %889 = vmatprep.subr.mxu0 0.0
    %890 = vmatpush1.msra.mxu0 0.0
    %891 = vmatprep.subr.mxu0 0.0
    %892 = vmatpush1.msra.mxu0 0.0
    %893 = vmatprep.mubr.f32.mxu0 0.0
    %894 = vmatmul.mubr.f32.gmra.mrb[0].mxu0 %v729
    %v895 = vpop.f32.mrb[0].mxu0
    %v896 = vadd.f32 0.0, %v895
    %v897 = vpop.f32.mrb[0].mxu0
    %v898 = vadd.f32 0.0, %v897
    %899 = vmatprep.mubr.f32.mxu0 0.0
    %900 = vmatmul.mubr.f32.gmra.mrb[0].mxu0 %v732
    %v901 = vpop.f32.mrb[0].mxu0
    %v902 = vadd.f32 0.0, %v901
    %v903 = vpop.f32.mrb[0].mxu0
    %v904 = vadd.f32 0.0, %v903
    %905 = vmatprep.mubr.f32.mxu0 0.0
    %906 = vmatmul.mubr.f32.gmra.mrb[0].mxu0 %v735
    %v907 = vpop.f32.mrb[0].mxu0
    %v908 = vadd.f32 0.0, %v907
    %v909 = vpop.f32.mrb[0].mxu0
    %v910 = vadd.f32 0.0, %v909
    %911 = vmatprep.mubr.f32.mxu0 0.0
    %912 = vmatmul.mubr.f32.gmra.mrb[0].mxu0 %v738
    %v913 = vpop.f32.mrb[0].mxu0
    %v914 = vadd.f32 0.0, %v913
    %v915 = vpop.f32.mrb[0].mxu0
    %v916 = vadd.f32 0.0, %v915
    %917 = vdwg.mxu0
    %918 = vmatprep.subr.mxu0 0.0
    %919 = vmatpush1.msra.mxu0 %v716
    %920 = vmatprep.subr.mxu0 0.0
    %921 = vmatpush1.msra.mxu0 %v721
    %922 = vmatprep.subr.mxu0 0.0
    %923 = vmatpush1.msra.mxu0 0.0
    %924 = vmatprep.subr.mxu0 0.0
    %925 = vmatpush1.msra.mxu0 0.0
    %926 = vmatprep.subr.mxu0 0.0
    %927 = vmatpush1.msra.mxu0 0.0
    %928 = vmatprep.subr.mxu0 0.0
    %929 = vmatpush1.msra.mxu0 0.0
    %930 = vmatprep.subr.mxu0 0.0
    %931 = vmatpush1.msra.mxu0 0.0
    %932 = vmatprep.subr.mxu0 0.0
    %933 = vmatpush1.msra.mxu0 0.0
    %934 = vmatprep.subr.mxu0 0.0
    %935 = vmatpush1.msra.mxu0 0.0
    %936 = vmatprep.subr.mxu0 0.0
    %937 = vmatpush1.msra.mxu0 0.0
    %938 = vmatprep.subr.mxu0 0.0
    %939 = vmatpush1.msra.mxu0 0.0
    %940 = vmatprep.subr.mxu0 0.0
    %941 = vmatpush1.msra.mxu0 0.0
    %942 = vmatprep.subr.mxu0 0.0
    %943 = vmatpush1.msra.mxu0 0.0
    %944 = vmatprep.subr.mxu0 0.0
    %945 = vmatpush1.msra.mxu0 0.0
    %946 = vmatprep.subr.mxu0 0.0
    %947 = vmatpush1.msra.mxu0 0.0
    %948 = vmatprep.subr.mxu0 0.0
    %949 = vmatpush1.msra.mxu0 0.0
    %950 = vmatprep.subr.mxu0 0.0
    %951 = vmatpush1.msra.mxu0 0.0
    %952 = vmatprep.subr.mxu0 0.0
    %953 = vmatpush1.msra.mxu0 0.0
    %954 = vmatprep.subr.mxu0 0.0
    %955 = vmatpush1.msra.mxu0 0.0
    %956 = vmatprep.subr.mxu0 0.0
    %957 = vmatpush1.msra.mxu0 0.0
    %958 = vmatprep.subr.mxu0 0.0
    %959 = vmatpush1.msra.mxu0 0.0
    %960 = vmatprep.subr.mxu0 0.0
    %961 = vmatpush1.msra.mxu0 0.0
    %962 = vmatprep.subr.mxu0 0.0
    %963 = vmatpush1.msra.mxu0 0.0
    %964 = vmatprep.subr.mxu0 0.0
    %965 = vmatpush1.msra.mxu0 0.0
    %966 = vmatprep.subr.mxu0 0.0
    %967 = vmatpush1.msra.mxu0 0.0
    %968 = vmatprep.subr.mxu0 0.0
    %969 = vmatpush1.msra.mxu0 0.0
    %970 = vmatprep.subr.mxu0 0.0
    %971 = vmatpush1.msra.mxu0 0.0
    %972 = vmatprep.subr.mxu0 0.0
    %973 = vmatpush1.msra.mxu0 0.0
    %974 = vmatprep.subr.mxu0 0.0
    %975 = vmatpush1.msra.mxu0 0.0
    %976 = vmatprep.subr.mxu0 0.0
    %977 = vmatpush1.msra.mxu0 0.0
    %978 = vmatprep.subr.mxu0 0.0
    %979 = vmatpush1.msra.mxu0 0.0
    %980 = vmatprep.subr.mxu0 0.0
    %981 = vmatpush1.msra.mxu0 0.0
    %982 = vmatprep.mubr.f32.mxu0 0.0
    %983 = vmatmul.mubr.f32.gmra.mrb[0].mxu0 %v729
    %v984 = vpop.f32.mrb[0].mxu0
    %v985 = vadd.f32 0.0, %v984
    %v986 = vpop.f32.mrb[0].mxu0
    %987 = vmatprep.mubr.f32.mxu0 0.0
    %988 = vmatmul.mubr.f32.gmra.mrb[0].mxu0 %v732
    %v989 = vpop.f32.mrb[0].mxu0
    %v990 = vadd.f32 0.0, %v989
    %v991 = vpop.f32.mrb[0].mxu0
    %992 = vmatprep.mubr.f32.mxu0 0.0
    %993 = vmatmul.mubr.f32.gmra.mrb[0].mxu0 %v735
    %v994 = vpop.f32.mrb[0].mxu0
    %v995 = vadd.f32 0.0, %v994
    %v996 = vpop.f32.mrb[0].mxu0
    %997 = vmatprep.mubr.f32.mxu0 0.0
    %998 = vmatmul.mubr.f32.gmra.mrb[0].mxu0 %v738
    %v999 = vpop.f32.mrb[0].mxu0
    %v1000 = vadd.f32 0.0, %v999
    %v1001 = vpop.f32.mrb[0].mxu0
    %1002 = vdwg.mxu0
    %v1003 = vld [vmem:[%s2] sm:$0xff]
    %v1004 = vld [vmem:[%s2 + $0x8] sm:$0xff]
    %v1005 = vld [vmem:[%s2 + $0x10] sm:$0xff]
    %v1006 = vld [vmem:[%s2 + $0x18] sm:$0xff]
    %v1007 = vld [vmem:[%s6] sm:$0xff]
    %v1008 = vld [vmem:[%s6 + $0x8] sm:$0xff]
    %v1009 = vld [vmem:[%s6 + $0x10] sm:$0xff]
    %v1010 = vld [vmem:[%s6 + $0x18] sm:$0xff]
    %v1011 = vld [vmem:[%s6 + $0x20] sm:$0xff]
    %vm1012 = vcmask 64512
    %v1014 = vsel %vm1012, %v1003, 0
    %v1017 = vsel %vm1012, %v1004, 0
    %v1020 = vsel %vm1012, %v1005, 0
    %v1023 = vsel %vm1012, %v1006, 0
    %1025 = vmatprep.subr.mxu0 %v1008
    %1026 = vmatpush1.msra.mxu0 %v1007
    %1027 = vmatprep.subr.mxu0 0.0
    %1028 = vmatpush1.msra.mxu0 0.0
    %1029 = vmatprep.subr.mxu0 0.0
    %1030 = vmatpush1.msra.mxu0 0.0
    %1031 = vmatprep.subr.mxu0 0.0
    %1032 = vmatpush1.msra.mxu0 0.0
    %1033 = vmatprep.subr.mxu0 0.0
    %1034 = vmatpush1.msra.mxu0 0.0
    %1035 = vmatprep.subr.mxu0 0.0
    %1036 = vmatpush1.msra.mxu0 0.0
    %1037 = vmatprep.subr.mxu0 0.0
    %1038 = vmatpush1.msra.mxu0 0.0
    %1039 = vmatprep.subr.mxu0 0.0
    %1040 = vmatpush1.msra.mxu0 0.0
    %1041 = vmatprep.subr.mxu0 0.0
    %1042 = vmatpush1.msra.mxu0 0.0
    %1043 = vmatprep.subr.mxu0 0.0
    %1044 = vmatpush1.msra.mxu0 0.0
    %1045 = vmatprep.subr.mxu0 0.0
    %1046 = vmatpush1.msra.mxu0 0.0
    %1047 = vmatprep.subr.mxu0 0.0
    %1048 = vmatpush1.msra.mxu0 0.0
    %1049 = vmatprep.subr.mxu0 0.0
    %1050 = vmatpush1.msra.mxu0 0.0
    %1051 = vmatprep.subr.mxu0 0.0
    %1052 = vmatpush1.msra.mxu0 0.0
    %1053 = vmatprep.subr.mxu0 0.0
    %1054 = vmatpush1.msra.mxu0 0.0
    %1055 = vmatprep.subr.mxu0 0.0
    %1056 = vmatpush1.msra.mxu0 0.0
    %1057 = vmatprep.subr.mxu0 0.0
    %1058 = vmatpush1.msra.mxu0 0.0
    %1059 = vmatprep.subr.mxu0 0.0
    %1060 = vmatpush1.msra.mxu0 0.0
    %1061 = vmatprep.subr.mxu0 0.0
    %1062 = vmatpush1.msra.mxu0 0.0
    %1063 = vmatprep.subr.mxu0 0.0
    %1064 = vmatpush1.msra.mxu0 0.0
    %1065 = vmatprep.subr.mxu0 0.0
    %1066 = vmatpush1.msra.mxu0 0.0
    %1067 = vmatprep.subr.mxu0 0.0
    %1068 = vmatpush1.msra.mxu0 0.0
    %1069 = vmatprep.subr.mxu0 0.0
    %1070 = vmatpush1.msra.mxu0 0.0
    %1071 = vmatprep.subr.mxu0 0.0
    %1072 = vmatpush1.msra.mxu0 0.0
    %1073 = vmatprep.subr.mxu0 0.0
    %1074 = vmatpush1.msra.mxu0 0.0
    %1075 = vmatprep.subr.mxu0 0.0
    %1076 = vmatpush1.msra.mxu0 0.0
    %1077 = vmatprep.subr.mxu0 0.0
    %1078 = vmatpush1.msra.mxu0 0.0
    %1079 = vmatprep.subr.mxu0 0.0
    %1080 = vmatpush1.msra.mxu0 0.0
    %1081 = vmatprep.subr.mxu0 0.0
    %1082 = vmatpush1.msra.mxu0 0.0
    %1083 = vmatprep.subr.mxu0 0.0
    %1084 = vmatpush1.msra.mxu0 0.0
    %1085 = vmatprep.subr.mxu0 0.0
    %1086 = vmatpush1.msra.mxu0 0.0
    %1087 = vmatprep.subr.mxu0 0.0
    %1088 = vmatpush1.msra.mxu0 0.0
    %1089 = vmatprep.mubr.f32.mxu0 0.0
    %1090 = vmatmul.mubr.f32.gmra.mrb[0].mxu0 %v1014
    %v1091 = vpop.f32.mrb[0].mxu0
    %v1092 = vadd.f32 0.0, %v1091
    %v1093 = vpop.f32.mrb[0].mxu0
    %v1094 = vadd.f32 0.0, %v1093
    %1095 = vmatprep.mubr.f32.mxu0 0.0
    %1096 = vmatmul.mubr.f32.gmra.mrb[0].mxu0 %v1017
    %v1097 = vpop.f32.mrb[0].mxu0
    %v1098 = vadd.f32 0.0, %v1097
    %v1099 = vpop.f32.mrb[0].mxu0
    %v1100 = vadd.f32 0.0, %v1099
    %1101 = vmatprep.mubr.f32.mxu0 0.0
    %1102 = vmatmul.mubr.f32.gmra.mrb[0].mxu0 %v1020
    %v1103 = vpop.f32.mrb[0].mxu0
    %v1104 = vadd.f32 0.0, %v1103
    %v1105 = vpop.f32.mrb[0].mxu0
    %v1106 = vadd.f32 0.0, %v1105
    %1107 = vmatprep.mubr.f32.mxu0 0.0
    %1108 = vmatmul.mubr.f32.gmra.mrb[0].mxu0 %v1023
    %v1109 = vpop.f32.mrb[0].mxu0
    %v1110 = vadd.f32 0.0, %v1109
    %v1111 = vpop.f32.mrb[0].mxu0
    %v1112 = vadd.f32 0.0, %v1111
    %1113 = vdwg.mxu0
    %1114 = vmatprep.subr.mxu0 %v1010
    %1115 = vmatpush1.msra.mxu0 %v1009
    %1116 = vmatprep.subr.mxu0 0.0
    %1117 = vmatpush1.msra.mxu0 0.0
    %1118 = vmatprep.subr.mxu0 0.0
    %1119 = vmatpush1.msra.mxu0 0.0
    %1120 = vmatprep.subr.mxu0 0.0
    %1121 = vmatpush1.msra.mxu0 0.0
    %1122 = vmatprep.subr.mxu0 0.0
    %1123 = vmatpush1.msra.mxu0 0.0
    %1124 = vmatprep.subr.mxu0 0.0
    %1125 = vmatpush1.msra.mxu0 0.0
    %1126 = vmatprep.subr.mxu0 0.0
    %1127 = vmatpush1.msra.mxu0 0.0
    %1128 = vmatprep.subr.mxu0 0.0
    %1129 = vmatpush1.msra.mxu0 0.0
    %1130 = vmatprep.subr.mxu0 0.0
    %1131 = vmatpush1.msra.mxu0 0.0
    %1132 = vmatprep.subr.mxu0 0.0
    %1133 = vmatpush1.msra.mxu0 0.0
    %1134 = vmatprep.subr.mxu0 0.0
    %1135 = vmatpush1.msra.mxu0 0.0
    %1136 = vmatprep.subr.mxu0 0.0
    %1137 = vmatpush1.msra.mxu0 0.0
    %1138 = vmatprep.subr.mxu0 0.0
    %1139 = vmatpush1.msra.mxu0 0.0
    %1140 = vmatprep.subr.mxu0 0.0
    %1141 = vmatpush1.msra.mxu0 0.0
    %1142 = vmatprep.subr.mxu0 0.0
    %1143 = vmatpush1.msra.mxu0 0.0
    %1144 = vmatprep.subr.mxu0 0.0
    %1145 = vmatpush1.msra.mxu0 0.0
    %1146 = vmatprep.subr.mxu0 0.0
    %1147 = vmatpush1.msra.mxu0 0.0
    %1148 = vmatprep.subr.mxu0 0.0
    %1149 = vmatpush1.msra.mxu0 0.0
    %1150 = vmatprep.subr.mxu0 0.0
    %1151 = vmatpush1.msra.mxu0 0.0
    %1152 = vmatprep.subr.mxu0 0.0
    %1153 = vmatpush1.msra.mxu0 0.0
    %1154 = vmatprep.subr.mxu0 0.0
    %1155 = vmatpush1.msra.mxu0 0.0
    %1156 = vmatprep.subr.mxu0 0.0
    %1157 = vmatpush1.msra.mxu0 0.0
    %1158 = vmatprep.subr.mxu0 0.0
    %1159 = vmatpush1.msra.mxu0 0.0
    %1160 = vmatprep.subr.mxu0 0.0
    %1161 = vmatpush1.msra.mxu0 0.0
    %1162 = vmatprep.subr.mxu0 0.0
    %1163 = vmatpush1.msra.mxu0 0.0
    %1164 = vmatprep.subr.mxu0 0.0
    %1165 = vmatpush1.msra.mxu0 0.0
    %1166 = vmatprep.subr.mxu0 0.0
    %1167 = vmatpush1.msra.mxu0 0.0
    %1168 = vmatprep.subr.mxu0 0.0
    %1169 = vmatpush1.msra.mxu0 0.0
    %1170 = vmatprep.subr.mxu0 0.0
    %1171 = vmatpush1.msra.mxu0 0.0
    %1172 = vmatprep.subr.mxu0 0.0
    %1173 = vmatpush1.msra.mxu0 0.0
    %1174 = vmatprep.subr.mxu0 0.0
    %1175 = vmatpush1.msra.mxu0 0.0
    %1176 = vmatprep.subr.mxu0 0.0
    %1177 = vmatpush1.msra.mxu0 0.0
    %1178 = vmatprep.mubr.f32.mxu0 0.0
    %1179 = vmatmul.mubr.f32.gmra.mrb[0].mxu0 %v1014
    %v1180 = vpop.f32.mrb[0].mxu0
    %v1181 = vadd.f32 0.0, %v1180
    %v1182 = vpop.f32.mrb[0].mxu0
    %v1183 = vadd.f32 0.0, %v1182
    %1184 = vmatprep.mubr.f32.mxu0 0.0
    %1185 = vmatmul.mubr.f32.gmra.mrb[0].mxu0 %v1017
    %v1186 = vpop.f32.mrb[0].mxu0
    %v1187 = vadd.f32 0.0, %v1186
    %v1188 = vpop.f32.mrb[0].mxu0
    %v1189 = vadd.f32 0.0, %v1188
    %1190 = vmatprep.mubr.f32.mxu0 0.0
    %1191 = vmatmul.mubr.f32.gmra.mrb[0].mxu0 %v1020
    %v1192 = vpop.f32.mrb[0].mxu0
    %v1193 = vadd.f32 0.0, %v1192
    %v1194 = vpop.f32.mrb[0].mxu0
    %v1195 = vadd.f32 0.0, %v1194
    %1196 = vmatprep.mubr.f32.mxu0 0.0
    %1197 = vmatmul.mubr.f32.gmra.mrb[0].mxu0 %v1023
    %v1198 = vpop.f32.mrb[0].mxu0
    %v1199 = vadd.f32 0.0, %v1198
    %v1200 = vpop.f32.mrb[0].mxu0
    %v1201 = vadd.f32 0.0, %v1200
    %1202 = vdwg.mxu0
    %1203 = vmatprep.subr.mxu0 0.0
    %1204 = vmatpush1.msra.mxu0 %v1011
    %1205 = vmatprep.subr.mxu0 0.0
    %1206 = vmatpush1.msra.mxu0 0.0
    %1207 = vmatprep.subr.mxu0 0.0
    %1208 = vmatpush1.msra.mxu0 0.0
    %1209 = vmatprep.subr.mxu0 0.0
    %1210 = vmatpush1.msra.mxu0 0.0
    %1211 = vmatprep.subr.mxu0 0.0
    %1212 = vmatpush1.msra.mxu0 0.0
    %1213 = vmatprep.subr.mxu0 0.0
    %1214 = vmatpush1.msra.mxu0 0.0
    %1215 = vmatprep.subr.mxu0 0.0
    %1216 = vmatpush1.msra.mxu0 0.0
    %1217 = vmatprep.subr.mxu0 0.0
    %1218 = vmatpush1.msra.mxu0 0.0
    %1219 = vmatprep.subr.mxu0 0.0
    %1220 = vmatpush1.msra.mxu0 0.0
    %1221 = vmatprep.subr.mxu0 0.0
    %1222 = vmatpush1.msra.mxu0 0.0
    %1223 = vmatprep.subr.mxu0 0.0
    %1224 = vmatpush1.msra.mxu0 0.0
    %1225 = vmatprep.subr.mxu0 0.0
    %1226 = vmatpush1.msra.mxu0 0.0
    %1227 = vmatprep.subr.mxu0 0.0
    %1228 = vmatpush1.msra.mxu0 0.0
    %1229 = vmatprep.subr.mxu0 0.0
    %1230 = vmatpush1.msra.mxu0 0.0
    %1231 = vmatprep.subr.mxu0 0.0
    %1232 = vmatpush1.msra.mxu0 0.0
    %1233 = vmatprep.subr.mxu0 0.0
    %1234 = vmatpush1.msra.mxu0 0.0
    %1235 = vmatprep.subr.mxu0 0.0
    %1236 = vmatpush1.msra.mxu0 0.0
    %1237 = vmatprep.subr.mxu0 0.0
    %1238 = vmatpush1.msra.mxu0 0.0
    %1239 = vmatprep.subr.mxu0 0.0
    %1240 = vmatpush1.msra.mxu0 0.0
    %1241 = vmatprep.subr.mxu0 0.0
    %1242 = vmatpush1.msra.mxu0 0.0
    %1243 = vmatprep.subr.mxu0 0.0
    %1244 = vmatpush1.msra.mxu0 0.0
    %1245 = vmatprep.subr.mxu0 0.0
    %1246 = vmatpush1.msra.mxu0 0.0
    %1247 = vmatprep.subr.mxu0 0.0
    %1248 = vmatpush1.msra.mxu0 0.0
    %1249 = vmatprep.subr.mxu0 0.0
    %1250 = vmatpush1.msra.mxu0 0.0
    %1251 = vmatprep.subr.mxu0 0.0
    %1252 = vmatpush1.msra.mxu0 0.0
    %1253 = vmatprep.subr.mxu0 0.0
    %1254 = vmatpush1.msra.mxu0 0.0
    %1255 = vmatprep.subr.mxu0 0.0
    %1256 = vmatpush1.msra.mxu0 0.0
    %1257 = vmatprep.subr.mxu0 0.0
    %1258 = vmatpush1.msra.mxu0 0.0
    %1259 = vmatprep.subr.mxu0 0.0
    %1260 = vmatpush1.msra.mxu0 0.0
    %1261 = vmatprep.subr.mxu0 0.0
    %1262 = vmatpush1.msra.mxu0 0.0
    %1263 = vmatprep.subr.mxu0 0.0
    %1264 = vmatpush1.msra.mxu0 0.0
    %1265 = vmatprep.subr.mxu0 0.0
    %1266 = vmatpush1.msra.mxu0 0.0
    %1267 = vmatprep.mubr.f32.mxu0 0.0
    %1268 = vmatmul.mubr.f32.gmra.mrb[0].mxu0 %v1014
    %v1269 = vpop.f32.mrb[0].mxu0
    %v1270 = vadd.f32 0.0, %v1269
    %v1271 = vpop.f32.mrb[0].mxu0
    %1272 = vmatprep.mubr.f32.mxu0 0.0
    %1273 = vmatmul.mubr.f32.gmra.mrb[0].mxu0 %v1017
    %v1274 = vpop.f32.mrb[0].mxu0
    %v1275 = vadd.f32 0.0, %v1274
    %v1276 = vpop.f32.mrb[0].mxu0
    %1277 = vmatprep.mubr.f32.mxu0 0.0
    %1278 = vmatmul.mubr.f32.gmra.mrb[0].mxu0 %v1020
    %v1279 = vpop.f32.mrb[0].mxu0
    %v1280 = vadd.f32 0.0, %v1279
    %v1281 = vpop.f32.mrb[0].mxu0
    %1282 = vmatprep.mubr.f32.mxu0 0.0
    %1283 = vmatmul.mubr.f32.gmra.mrb[0].mxu0 %v1023
    %v1284 = vpop.f32.mrb[0].mxu0
    %v1285 = vadd.f32 0.0, %v1284
    %v1286 = vpop.f32.mrb[0].mxu0
    %1287 = vdwg.mxu0
    %v1288 = vmul.f32 %v807, %v1092
    %v1289 = vmul.f32 %v809, %v1094
    %v1290 = vmul.f32 %v896, %v1181
    %v1291 = vmul.f32 %v898, %v1183
    %v1292 = vmul.f32 %v985, %v1270
    %v1293 = vmul.f32 %v813, %v1098
    %v1294 = vmul.f32 %v815, %v1100
    %v1295 = vmul.f32 %v902, %v1187
    %v1296 = vmul.f32 %v904, %v1189
    %v1297 = vmul.f32 %v990, %v1275
    %v1298 = vmul.f32 %v819, %v1104
    %v1299 = vmul.f32 %v821, %v1106
    %v1300 = vmul.f32 %v908, %v1193
    %v1301 = vmul.f32 %v910, %v1195
    %v1302 = vmul.f32 %v995, %v1280
    %v1303 = vmul.f32 %v825, %v1110
    %v1304 = vmul.f32 %v827, %v1112
    %v1305 = vmul.f32 %v914, %v1199
    %v1306 = vmul.f32 %v916, %v1201
    %v1307 = vmul.f32 %v1000, %v1285
    %v1308 = vmul.f32 %v1288, %v271
    %v1309 = vmul.f32 %v1289, %v273
    %v1310 = vmul.f32 %v1290, %v360
    %v1311 = vmul.f32 %v1291, %v362
    %v1312 = vmul.f32 %v1292, %v449
    %v1313 = vmul.f32 %v1293, %v277
    %v1314 = vmul.f32 %v1294, %v279
    %v1315 = vmul.f32 %v1295, %v366
    %v1316 = vmul.f32 %v1296, %v368
    %v1317 = vmul.f32 %v1297, %v454
    %v1318 = vmul.f32 %v1298, %v283
    %v1319 = vmul.f32 %v1299, %v285
    %v1320 = vmul.f32 %v1300, %v372
    %v1321 = vmul.f32 %v1301, %v374
    %v1322 = vmul.f32 %v1302, %v459
    %v1323 = vmul.f32 %v1303, %v289
    %v1324 = vmul.f32 %v1304, %v291
    %v1325 = vmul.f32 %v1305, %v378
    %v1326 = vmul.f32 %v1306, %v380
    %v1327 = vmul.f32 %v1307, %v464
    %v1328 = vld [vmem:[%s9] sm:$0xff]
    %v1329 = vld [vmem:[%s9 + $0x8] sm:$0xff]
    %v1330 = vld [vmem:[%s9 + $0x10] sm:$0xff]
    %v1331 = vld [vmem:[%s9 + $0x18] sm:$0xff]
    %v1332 = vld [vmem:[%s9 + $0x20] sm:$0xff]
    %v1333 = vld [vmem:[%s9 + $0x28] sm:$0xff]
    %v1334 = vld [vmem:[%s9 + $0x30] sm:$0xff]
    %v1335 = vld [vmem:[%s9 + $0x38] sm:$0xff]
    %v1336 = vld [vmem:[%s9 + $0x40] sm:$0xff]
    %v1337 = vld [vmem:[%s9 + $0x48] sm:$0xff]
    %v1338 = vld [vmem:[%s9 + $0x50] sm:$0xff]
    %v1339 = vld [vmem:[%s9 + $0x58] sm:$0xff]
    %v1340 = vld [vmem:[%s9 + $0x60] sm:$0xff]
    %v1341 = vld [vmem:[%s9 + $0x68] sm:$0xff]
    %v1342 = vld [vmem:[%s9 + $0x70] sm:$0xff]
    %v1343 = vld [vmem:[%s9 + $0x78] sm:$0xff]
    %v1344 = vld [vmem:[%s9 + $0x80] sm:$0xff]
    %v1345 = vld [vmem:[%s9 + $0x88] sm:$0xff]
    %v1346 = vld [vmem:[%s9 + $0x90] sm:$0xff]
    %v1347 = vld [vmem:[%s9 + $0x98] sm:$0xff]
    %v1348 = vld [vmem:[%s9 + $0xa0] sm:$0xff]
    %v1349 = vld [vmem:[%s9 + $0xa8] sm:$0xff]
    %v1350 = vld [vmem:[%s9 + $0xb0] sm:$0xff]
    %v1351 = vld [vmem:[%s9 + $0xb8] sm:$0xff]
    %v1352 = vld [vmem:[%s9 + $0xc0] sm:$0xff]
    %v1353 = vld [vmem:[%s9 + $0xc8] sm:$0xff]
    %v1354 = vld [vmem:[%s9 + $0xd0] sm:$0xff]
    %v1355 = vld [vmem:[%s9 + $0xd8] sm:$0xff]
    %v1356 = vld [vmem:[%s9 + $0xe0] sm:$0xff]
    %v1357 = vld [vmem:[%s9 + $0xe8] sm:$0xff]
    %v1358 = vld [vmem:[%s9 + $0xf0] sm:$0xff]
    %v1359 = vld [vmem:[%s9 + $0xf8] sm:$0xff]
    %v1360 = vld [vmem:[%s9 + $0x100] sm:$0xff]
    %v1361 = vld [vmem:[%s9 + $0x108] sm:$0xff]
    %v1362 = vld [vmem:[%s9 + $0x110] sm:$0xff]
    %v1363 = vld [vmem:[%s9 + $0x118] sm:$0xff]
    %v1364 = vld [vmem:[%s9 + $0x120] sm:$0xff]
    %v1365 = vld [vmem:[%s9 + $0x128] sm:$0xff]
    %v1366 = vld [vmem:[%s9 + $0x130] sm:$0xff]
    %v1367 = vld [vmem:[%s9 + $0x138] sm:$0xff]
    %v1368 = vld [vmem:[%s9 + $0x140] sm:$0xff]
    %v1369 = vld [vmem:[%s9 + $0x148] sm:$0xff]
    %v1370 = vld [vmem:[%s9 + $0x150] sm:$0xff]
    %v1371 = vld [vmem:[%s9 + $0x158] sm:$0xff]
    %v1372 = vld [vmem:[%s9 + $0x160] sm:$0xff]
    %v1373 = vld [vmem:[%s9 + $0x168] sm:$0xff]
    %v1374 = vld [vmem:[%s9 + $0x170] sm:$0xff]
    %v1375 = vld [vmem:[%s9 + $0x178] sm:$0xff]
    %v1376 = vld [vmem:[%s9 + $0x180] sm:$0xff]
    %v1377 = vld [vmem:[%s9 + $0x188] sm:$0xff]
    %v1378 = vld [vmem:[%s9 + $0x190] sm:$0xff]
    %v1379 = vld [vmem:[%s9 + $0x198] sm:$0xff]
    %v1380 = vld [vmem:[%s9 + $0x1a0] sm:$0xff]
    %v1381 = vld [vmem:[%s9 + $0x1a8] sm:$0xff]
    %v1382 = vld [vmem:[%s9 + $0x1b0] sm:$0xff]
    %v1383 = vld [vmem:[%s9 + $0x1b8] sm:$0xff]
    %v1384 = vld [vmem:[%s9 + $0x1c0] sm:$0xff]
    %v1385 = vld [vmem:[%s9 + $0x1c8] sm:$0xff]
    %v1386 = vld [vmem:[%s9 + $0x1d0] sm:$0xff]
    %v1387 = vld [vmem:[%s9 + $0x1d8] sm:$0xff]
    %v1388 = vld [vmem:[%s9 + $0x1e0] sm:$0xff]
    %v1389 = vld [vmem:[%s9 + $0x1e8] sm:$0xff]
    %v1390 = vld [vmem:[%s9 + $0x1f0] sm:$0xff]
    %v1391 = vld [vmem:[%s9 + $0x1f8] sm:$0xff]
    %v1392 = vld [vmem:[%s9 + $0x200] sm:$0xff]
    %v1393 = vld [vmem:[%s9 + $0x208] sm:$0xff]
    %v1394 = vld [vmem:[%s9 + $0x210] sm:$0xff]
    %v1395 = vld [vmem:[%s9 + $0x218] sm:$0xff]
    %v1396 = vld [vmem:[%s9 + $0x220] sm:$0xff]
    %v1397 = vld [vmem:[%s9 + $0x228] sm:$0xff]
    %v1398 = vld [vmem:[%s9 + $0x230] sm:$0xff]
    %v1399 = vld [vmem:[%s9 + $0x238] sm:$0xff]
    %v1400 = vld [vmem:[%s9 + $0x240] sm:$0xff]
    %v1401 = vld [vmem:[%s9 + $0x248] sm:$0xff]
    %v1402 = vld [vmem:[%s9 + $0x250] sm:$0xff]
    %v1403 = vld [vmem:[%s9 + $0x258] sm:$0xff]
    %v1404 = vld [vmem:[%s9 + $0x260] sm:$0xff]
    %v1405 = vld [vmem:[%s9 + $0x268] sm:$0xff]
    %v1406 = vld [vmem:[%s9 + $0x270] sm:$0xff]
    %v1407 = vld [vmem:[%s9 + $0x278] sm:$0xff]
    %1408 = vmatprep.subr.mxu0 0.0
    %1409 = vmatpush1.msra.mxu0 %v1328
    %1410 = vmatprep.subr.mxu0 0.0
    %1411 = vmatpush1.msra.mxu0 %v1329
    %1412 = vmatprep.subr.mxu0 0.0
    %1413 = vmatpush1.msra.mxu0 %v1330
    %1414 = vmatprep.subr.mxu0 0.0
    %1415 = vmatpush1.msra.mxu0 %v1331
    %1416 = vmatprep.subr.mxu0 0.0
    %1417 = vmatpush1.msra.mxu0 %v1332
    %1418 = vmatprep.subr.mxu0 0.0
    %1419 = vmatpush1.msra.mxu0 %v1333
    %1420 = vmatprep.subr.mxu0 0.0
    %1421 = vmatpush1.msra.mxu0 %v1334
    %1422 = vmatprep.subr.mxu0 0.0
    %1423 = vmatpush1.msra.mxu0 %v1335
    %1424 = vmatprep.subr.mxu0 0.0
    %1425 = vmatpush1.msra.mxu0 %v1336
    %1426 = vmatprep.subr.mxu0 0.0
    %1427 = vmatpush1.msra.mxu0 %v1337
    %1428 = vmatprep.subr.mxu0 0.0
    %1429 = vmatpush1.msra.mxu0 %v1338
    %1430 = vmatprep.subr.mxu0 0.0
    %1431 = vmatpush1.msra.mxu0 %v1339
    %1432 = vmatprep.subr.mxu0 0.0
    %1433 = vmatpush1.msra.mxu0 %v1340
    %1434 = vmatprep.subr.mxu0 0.0
    %1435 = vmatpush1.msra.mxu0 %v1341
    %1436 = vmatprep.subr.mxu0 0.0
    %1437 = vmatpush1.msra.mxu0 %v1342
    %1438 = vmatprep.subr.mxu0 0.0
    %1439 = vmatpush1.msra.mxu0 %v1343
    %1440 = vmatprep.subr.mxu0 0.0
    %1441 = vmatpush1.msra.mxu0 %v1344
    %1442 = vmatprep.subr.mxu0 0.0
    %1443 = vmatpush1.msra.mxu0 %v1345
    %1444 = vmatprep.subr.mxu0 0.0
    %1445 = vmatpush1.msra.mxu0 %v1346
    %1446 = vmatprep.subr.mxu0 0.0
    %1447 = vmatpush1.msra.mxu0 %v1347
    %1448 = vmatprep.subr.mxu0 0.0
    %1449 = vmatpush1.msra.mxu0 %v1348
    %1450 = vmatprep.subr.mxu0 0.0
    %1451 = vmatpush1.msra.mxu0 %v1349
    %1452 = vmatprep.subr.mxu0 0.0
    %1453 = vmatpush1.msra.mxu0 %v1350
    %1454 = vmatprep.subr.mxu0 0.0
    %1455 = vmatpush1.msra.mxu0 %v1351
    %1456 = vmatprep.subr.mxu0 0.0
    %1457 = vmatpush1.msra.mxu0 %v1352
    %1458 = vmatprep.subr.mxu0 0.0
    %1459 = vmatpush1.msra.mxu0 %v1353
    %1460 = vmatprep.subr.mxu0 0.0
    %1461 = vmatpush1.msra.mxu0 %v1354
    %1462 = vmatprep.subr.mxu0 0.0
    %1463 = vmatpush1.msra.mxu0 %v1355
    %1464 = vmatprep.subr.mxu0 0.0
    %1465 = vmatpush1.msra.mxu0 %v1356
    %1466 = vmatprep.subr.mxu0 0.0
    %1467 = vmatpush1.msra.mxu0 %v1357
    %1468 = vmatprep.subr.mxu0 0.0
    %1469 = vmatpush1.msra.mxu0 %v1358
    %1470 = vmatprep.subr.mxu0 0.0
    %1471 = vmatpush1.msra.mxu0 %v1359
    %1472 = vmatprep.mubr.f32.mxu0 %v1309
    %1473 = vmatmul.mubr.f32.gmra.mrb[0].mxu0 %v1308
    %v1474 = vpop.f32.mrb[0].mxu0
    %v1475 = vadd.f32 0.0, %v1474
    %v1476 = vpop.f32.mrb[0].mxu0
    %1477 = vmatprep.mubr.f32.mxu0 %v1314
    %1478 = vmatmul.mubr.f32.gmra.mrb[0].mxu0 %v1313
    %v1479 = vpop.f32.mrb[0].mxu0
    %v1480 = vadd.f32 0.0, %v1479
    %v1481 = vpop.f32.mrb[0].mxu0
    %1482 = vmatprep.mubr.f32.mxu0 %v1319
    %1483 = vmatmul.mubr.f32.gmra.mrb[0].mxu0 %v1318
    %v1484 = vpop.f32.mrb[0].mxu0
    %v1485 = vadd.f32 0.0, %v1484
    %v1486 = vpop.f32.mrb[0].mxu0
    %1487 = vmatprep.mubr.f32.mxu0 %v1324
    %1488 = vmatmul.mubr.f32.gmra.mrb[0].mxu0 %v1323
    %v1489 = vpop.f32.mrb[0].mxu0
    %v1490 = vadd.f32 0.0, %v1489
    %v1491 = vpop.f32.mrb[0].mxu0
    %1492 = vdwg.mxu0
    %1493 = vmatprep.subr.mxu0 0.0
    %1494 = vmatpush1.msra.mxu0 %v1360
    %1495 = vmatprep.subr.mxu0 0.0
    %1496 = vmatpush1.msra.mxu0 %v1361
    %1497 = vmatprep.subr.mxu0 0.0
    %1498 = vmatpush1.msra.mxu0 %v1362
    %1499 = vmatprep.subr.mxu0 0.0
    %1500 = vmatpush1.msra.mxu0 %v1363
    %1501 = vmatprep.subr.mxu0 0.0
    %1502 = vmatpush1.msra.mxu0 %v1364
    %1503 = vmatprep.subr.mxu0 0.0
    %1504 = vmatpush1.msra.mxu0 %v1365
    %1505 = vmatprep.subr.mxu0 0.0
    %1506 = vmatpush1.msra.mxu0 %v1366
    %1507 = vmatprep.subr.mxu0 0.0
    %1508 = vmatpush1.msra.mxu0 %v1367
    %1509 = vmatprep.subr.mxu0 0.0
    %1510 = vmatpush1.msra.mxu0 %v1368
    %1511 = vmatprep.subr.mxu0 0.0
    %1512 = vmatpush1.msra.mxu0 %v1369
    %1513 = vmatprep.subr.mxu0 0.0
    %1514 = vmatpush1.msra.mxu0 %v1370
    %1515 = vmatprep.subr.mxu0 0.0
    %1516 = vmatpush1.msra.mxu0 %v1371
    %1517 = vmatprep.subr.mxu0 0.0
    %1518 = vmatpush1.msra.mxu0 %v1372
    %1519 = vmatprep.subr.mxu0 0.0
    %1520 = vmatpush1.msra.mxu0 %v1373
    %1521 = vmatprep.subr.mxu0 0.0
    %1522 = vmatpush1.msra.mxu0 %v1374
    %1523 = vmatprep.subr.mxu0 0.0
    %1524 = vmatpush1.msra.mxu0 %v1375
    %1525 = vmatprep.subr.mxu0 0.0
    %1526 = vmatpush1.msra.mxu0 %v1376
    %1527 = vmatprep.subr.mxu0 0.0
    %1528 = vmatpush1.msra.mxu0 %v1377
    %1529 = vmatprep.subr.mxu0 0.0
    %1530 = vmatpush1.msra.mxu0 %v1378
    %1531 = vmatprep.subr.mxu0 0.0
    %1532 = vmatpush1.msra.mxu0 %v1379
    %1533 = vmatprep.subr.mxu0 0.0
    %1534 = vmatpush1.msra.mxu0 %v1380
    %1535 = vmatprep.subr.mxu0 0.0
    %1536 = vmatpush1.msra.mxu0 %v1381
    %1537 = vmatprep.subr.mxu0 0.0
    %1538 = vmatpush1.msra.mxu0 %v1382
    %1539 = vmatprep.subr.mxu0 0.0
    %1540 = vmatpush1.msra.mxu0 %v1383
    %1541 = vmatprep.subr.mxu0 0.0
    %1542 = vmatpush1.msra.mxu0 %v1384
    %1543 = vmatprep.subr.mxu0 0.0
    %1544 = vmatpush1.msra.mxu0 %v1385
    %1545 = vmatprep.subr.mxu0 0.0
    %1546 = vmatpush1.msra.mxu0 %v1386
    %1547 = vmatprep.subr.mxu0 0.0
    %1548 = vmatpush1.msra.mxu0 %v1387
    %1549 = vmatprep.subr.mxu0 0.0
    %1550 = vmatpush1.msra.mxu0 %v1388
    %1551 = vmatprep.subr.mxu0 0.0
    %1552 = vmatpush1.msra.mxu0 %v1389
    %1553 = vmatprep.subr.mxu0 0.0
    %1554 = vmatpush1.msra.mxu0 %v1390
    %1555 = vmatprep.subr.mxu0 0.0
    %1556 = vmatpush1.msra.mxu0 %v1391
    %1557 = vmatprep.mubr.f32.mxu0 %v1311
    %1558 = vmatmul.mubr.f32.gmra.mrb[0].mxu0 %v1310
    %v1559 = vpop.f32.mrb[0].mxu0
    %v1560 = vadd.f32 %v1475, %v1559
    %v1561 = vpop.f32.mrb[0].mxu0
    %1562 = vmatprep.mubr.f32.mxu0 %v1316
    %1563 = vmatmul.mubr.f32.gmra.mrb[0].mxu0 %v1315
    %v1564 = vpop.f32.mrb[0].mxu0
    %v1565 = vadd.f32 %v1480, %v1564
    %v1566 = vpop.f32.mrb[0].mxu0
    %1567 = vmatprep.mubr.f32.mxu0 %v1321
    %1568 = vmatmul.mubr.f32.gmra.mrb[0].mxu0 %v1320
    %v1569 = vpop.f32.mrb[0].mxu0
    %v1570 = vadd.f32 %v1485, %v1569
    %v1571 = vpop.f32.mrb[0].mxu0
    %1572 = vmatprep.mubr.f32.mxu0 %v1326
    %1573 = vmatmul.mubr.f32.gmra.mrb[0].mxu0 %v1325
    %v1574 = vpop.f32.mrb[0].mxu0
    %v1575 = vadd.f32 %v1490, %v1574
    %v1576 = vpop.f32.mrb[0].mxu0
    %1577 = vdwg.mxu0
    %1578 = vmatprep.subr.mxu0 0.0
    %1579 = vmatpush1.msra.mxu0 %v1392
    %1580 = vmatprep.subr.mxu0 0.0
    %1581 = vmatpush1.msra.mxu0 %v1393
    %1582 = vmatprep.subr.mxu0 0.0
    %1583 = vmatpush1.msra.mxu0 %v1394
    %1584 = vmatprep.subr.mxu0 0.0
    %1585 = vmatpush1.msra.mxu0 %v1395
    %1586 = vmatprep.subr.mxu0 0.0
    %1587 = vmatpush1.msra.mxu0 %v1396
    %1588 = vmatprep.subr.mxu0 0.0
    %1589 = vmatpush1.msra.mxu0 %v1397
    %1590 = vmatprep.subr.mxu0 0.0
    %1591 = vmatpush1.msra.mxu0 %v1398
    %1592 = vmatprep.subr.mxu0 0.0
    %1593 = vmatpush1.msra.mxu0 %v1399
    %1594 = vmatprep.subr.mxu0 0.0
    %1595 = vmatpush1.msra.mxu0 %v1400
    %1596 = vmatprep.subr.mxu0 0.0
    %1597 = vmatpush1.msra.mxu0 %v1401
    %1598 = vmatprep.subr.mxu0 0.0
    %1599 = vmatpush1.msra.mxu0 %v1402
    %1600 = vmatprep.subr.mxu0 0.0
    %1601 = vmatpush1.msra.mxu0 %v1403
    %1602 = vmatprep.subr.mxu0 0.0
    %1603 = vmatpush1.msra.mxu0 %v1404
    %1604 = vmatprep.subr.mxu0 0.0
    %1605 = vmatpush1.msra.mxu0 %v1405
    %1606 = vmatprep.subr.mxu0 0.0
    %1607 = vmatpush1.msra.mxu0 %v1406
    %1608 = vmatprep.subr.mxu0 0.0
    %1609 = vmatpush1.msra.mxu0 %v1407
    %1610 = vmatprep.subr.mxu0 0.0
    %1611 = vmatpush1.msra.mxu0 0.0
    %1612 = vmatprep.subr.mxu0 0.0
    %1613 = vmatpush1.msra.mxu0 0.0
    %1614 = vmatprep.subr.mxu0 0.0
    %1615 = vmatpush1.msra.mxu0 0.0
    %1616 = vmatprep.subr.mxu0 0.0
    %1617 = vmatpush1.msra.mxu0 0.0
    %1618 = vmatprep.subr.mxu0 0.0
    %1619 = vmatpush1.msra.mxu0 0.0
    %1620 = vmatprep.subr.mxu0 0.0
    %1621 = vmatpush1.msra.mxu0 0.0
    %1622 = vmatprep.subr.mxu0 0.0
    %1623 = vmatpush1.msra.mxu0 0.0
    %1624 = vmatprep.subr.mxu0 0.0
    %1625 = vmatpush1.msra.mxu0 0.0
    %1626 = vmatprep.subr.mxu0 0.0
    %1627 = vmatpush1.msra.mxu0 0.0
    %1628 = vmatprep.subr.mxu0 0.0
    %1629 = vmatpush1.msra.mxu0 0.0
    %1630 = vmatprep.subr.mxu0 0.0
    %1631 = vmatpush1.msra.mxu0 0.0
    %1632 = vmatprep.subr.mxu0 0.0
    %1633 = vmatpush1.msra.mxu0 0.0
    %1634 = vmatprep.subr.mxu0 0.0
    %1635 = vmatpush1.msra.mxu0 0.0
    %1636 = vmatprep.subr.mxu0 0.0
    %1637 = vmatpush1.msra.mxu0 0.0
    %1638 = vmatprep.subr.mxu0 0.0
    %1639 = vmatpush1.msra.mxu0 0.0
    %1640 = vmatprep.subr.mxu0 0.0
    %1641 = vmatpush1.msra.mxu0 0.0
    %1642 = vmatprep.mubr.f32.mxu0 0.0
    %1643 = vmatmul.mubr.f32.gmra.mrb[0].mxu0 %v1312
    %v1644 = vpop.f32.mrb[0].mxu0
    %v1645 = vadd.f32 %v1560, %v1644
    %v1646 = vpop.f32.mrb[0].mxu0
    %1647 = vmatprep.mubr.f32.mxu0 0.0
    %1648 = vmatmul.mubr.f32.gmra.mrb[0].mxu0 %v1317
    %v1649 = vpop.f32.mrb[0].mxu0
    %v1650 = vadd.f32 %v1565, %v1649
    %v1651 = vpop.f32.mrb[0].mxu0
    %1652 = vmatprep.mubr.f32.mxu0 0.0
    %1653 = vmatmul.mubr.f32.gmra.mrb[0].mxu0 %v1322
    %v1654 = vpop.f32.mrb[0].mxu0
    %v1655 = vadd.f32 %v1570, %v1654
    %v1656 = vpop.f32.mrb[0].mxu0
    %1657 = vmatprep.mubr.f32.mxu0 0.0
    %1658 = vmatmul.mubr.f32.gmra.mrb[0].mxu0 %v1327
    %v1659 = vpop.f32.mrb[0].mxu0
    %v1660 = vadd.f32 %v1575, %v1659
    %v1661 = vpop.f32.mrb[0].mxu0
    %1662 = vdwg.mxu0
    %v1663 = vld [vmem:[%s1] sm:$0xff]
    %v1664 = vld [vmem:[%s1 + $0x8] sm:$0xff]
    %v1665 = vld [vmem:[%s10] sm:$0xff]
    %v1666 = vld [vmem:[%s10 + $0x8] sm:$0xff]
    %v1667 = vld [vmem:[%s10 + $0x10] sm:$0xff]
    %v1668 = vld [vmem:[%s10 + $0x18] sm:$0xff]
    %1669 = vmatprep.subr.mxu0 0.0
    %1670 = vmatpush1.msra.mxu0 %v1665
    %1671 = vmatprep.subr.mxu0 0.0
    %1672 = vmatpush1.msra.mxu0 %v1666
    %1673 = vmatprep.subr.mxu0 0.0
    %1674 = vmatpush1.msra.mxu0 %v1667
    %1675 = vmatprep.subr.mxu0 0.0
    %1676 = vmatpush1.msra.mxu0 %v1668
    %1677 = vmatprep.subr.mxu0 0.0
    %1678 = vmatpush1.msra.mxu0 0.0
    %1679 = vmatprep.subr.mxu0 0.0
    %1680 = vmatpush1.msra.mxu0 0.0
    %1681 = vmatprep.subr.mxu0 0.0
    %1682 = vmatpush1.msra.mxu0 0.0
    %1683 = vmatprep.subr.mxu0 0.0
    %1684 = vmatpush1.msra.mxu0 0.0
    %1685 = vmatprep.subr.mxu0 0.0
    %1686 = vmatpush1.msra.mxu0 0.0
    %1687 = vmatprep.subr.mxu0 0.0
    %1688 = vmatpush1.msra.mxu0 0.0
    %1689 = vmatprep.subr.mxu0 0.0
    %1690 = vmatpush1.msra.mxu0 0.0
    %1691 = vmatprep.subr.mxu0 0.0
    %1692 = vmatpush1.msra.mxu0 0.0
    %1693 = vmatprep.subr.mxu0 0.0
    %1694 = vmatpush1.msra.mxu0 0.0
    %1695 = vmatprep.subr.mxu0 0.0
    %1696 = vmatpush1.msra.mxu0 0.0
    %1697 = vmatprep.subr.mxu0 0.0
    %1698 = vmatpush1.msra.mxu0 0.0
    %1699 = vmatprep.subr.mxu0 0.0
    %1700 = vmatpush1.msra.mxu0 0.0
    %1701 = vmatprep.subr.mxu0 0.0
    %1702 = vmatpush1.msra.mxu0 0.0
    %1703 = vmatprep.subr.mxu0 0.0
    %1704 = vmatpush1.msra.mxu0 0.0
    %1705 = vmatprep.subr.mxu0 0.0
    %1706 = vmatpush1.msra.mxu0 0.0
    %1707 = vmatprep.subr.mxu0 0.0
    %1708 = vmatpush1.msra.mxu0 0.0
    %1709 = vmatprep.subr.mxu0 0.0
    %1710 = vmatpush1.msra.mxu0 0.0
    %1711 = vmatprep.subr.mxu0 0.0
    %1712 = vmatpush1.msra.mxu0 0.0
    %1713 = vmatprep.subr.mxu0 0.0
    %1714 = vmatpush1.msra.mxu0 0.0
    %1715 = vmatprep.subr.mxu0 0.0
    %1716 = vmatpush1.msra.mxu0 0.0
    %1717 = vmatprep.subr.mxu0 0.0
    %1718 = vmatpush1.msra.mxu0 0.0
    %1719 = vmatprep.subr.mxu0 0.0
    %1720 = vmatpush1.msra.mxu0 0.0
    %1721 = vmatprep.subr.mxu0 0.0
    %1722 = vmatpush1.msra.mxu0 0.0
    %1723 = vmatprep.subr.mxu0 0.0
    %1724 = vmatpush1.msra.mxu0 0.0
    %1725 = vmatprep.subr.mxu0 0.0
    %1726 = vmatpush1.msra.mxu0 0.0
    %1727 = vmatprep.subr.mxu0 0.0
    %1728 = vmatpush1.msra.mxu0 0.0
    %1729 = vmatprep.subr.mxu0 0.0
    %1730 = vmatpush1.msra.mxu0 0.0
    %1731 = vmatprep.subr.mxu0 0.0
    %1732 = vmatpush1.msra.mxu0 0.0
    %1733 = vmatprep.mubr.f32.mxu0 0.0
    %1734 = vmatmul.mubr.f32.gmra.mrb[0].mxu0 %v490
    %v1735 = vpop.f32.mrb[0].mxu0
    %v1736 = vadd.f32 0.0, %v1735
    %v1737 = vpop.f32.mrb[0].mxu0
    %1738 = vmatprep.mubr.f32.mxu0 0.0
    %1739 = vmatmul.mubr.f32.gmra.mrb[0].mxu0 %v493
    %v1740 = vpop.f32.mrb[0].mxu0
    %v1741 = vadd.f32 0.0, %v1740
    %v1742 = vpop.f32.mrb[0].mxu0
    %1743 = vdwg.mxu0
    %v1745 = vsel %vm191, %v1663, 0
    %v1748 = vsel %vm191, %v1664, 0
    %1750 = vmatprep.subr.mxu0 0.0
    %1751 = vmatpush1.msra.mxu0 %v1645
    %1752 = vmatprep.subr.mxu0 0.0
    %1753 = vmatpush1.msra.mxu0 %v1650
    %1754 = vmatprep.subr.mxu0 0.0
    %1755 = vmatpush1.msra.mxu0 %v1655
    %1756 = vmatprep.subr.mxu0 0.0
    %1757 = vmatpush1.msra.mxu0 %v1660
    %1758 = vmatprep.subr.mxu0 0.0
    %1759 = vmatpush1.msra.mxu0 0.0
    %1760 = vmatprep.subr.mxu0 0.0
    %1761 = vmatpush1.msra.mxu0 0.0
    %1762 = vmatprep.subr.mxu0 0.0
    %1763 = vmatpush1.msra.mxu0 0.0
    %1764 = vmatprep.subr.mxu0 0.0
    %1765 = vmatpush1.msra.mxu0 0.0
    %1766 = vmatprep.subr.mxu0 0.0
    %1767 = vmatpush1.msra.mxu0 0.0
    %1768 = vmatprep.subr.mxu0 0.0
    %1769 = vmatpush1.msra.mxu0 0.0
    %1770 = vmatprep.subr.mxu0 0.0
    %1771 = vmatpush1.msra.mxu0 0.0
    %1772 = vmatprep.subr.mxu0 0.0
    %1773 = vmatpush1.msra.mxu0 0.0
    %1774 = vmatprep.subr.mxu0 0.0
    %1775 = vmatpush1.msra.mxu0 0.0
    %1776 = vmatprep.subr.mxu0 0.0
    %1777 = vmatpush1.msra.mxu0 0.0
    %1778 = vmatprep.subr.mxu0 0.0
    %1779 = vmatpush1.msra.mxu0 0.0
    %1780 = vmatprep.subr.mxu0 0.0
    %1781 = vmatpush1.msra.mxu0 0.0
    %1782 = vmatprep.subr.mxu0 0.0
    %1783 = vmatpush1.msra.mxu0 0.0
    %1784 = vmatprep.subr.mxu0 0.0
    %1785 = vmatpush1.msra.mxu0 0.0
    %1786 = vmatprep.subr.mxu0 0.0
    %1787 = vmatpush1.msra.mxu0 0.0
    %1788 = vmatprep.subr.mxu0 0.0
    %1789 = vmatpush1.msra.mxu0 0.0
    %1790 = vmatprep.subr.mxu0 0.0
    %1791 = vmatpush1.msra.mxu0 0.0
    %1792 = vmatprep.subr.mxu0 0.0
    %1793 = vmatpush1.msra.mxu0 0.0
    %1794 = vmatprep.subr.mxu0 0.0
    %1795 = vmatpush1.msra.mxu0 0.0
    %1796 = vmatprep.subr.mxu0 0.0
    %1797 = vmatpush1.msra.mxu0 0.0
    %1798 = vmatprep.subr.mxu0 0.0
    %1799 = vmatpush1.msra.mxu0 0.0
    %1800 = vmatprep.subr.mxu0 0.0
    %1801 = vmatpush1.msra.mxu0 0.0
    %1802 = vmatprep.subr.mxu0 0.0
    %1803 = vmatpush1.msra.mxu0 0.0
    %1804 = vmatprep.subr.mxu0 0.0
    %1805 = vmatpush1.msra.mxu0 0.0
    %1806 = vmatprep.subr.mxu0 0.0
    %1807 = vmatpush1.msra.mxu0 0.0
    %1808 = vmatprep.subr.mxu0 0.0
    %1809 = vmatpush1.msra.mxu0 0.0
    %1810 = vmatprep.subr.mxu0 0.0
    %1811 = vmatpush1.msra.mxu0 0.0
    %1812 = vmatprep.subr.mxu0 0.0
    %1813 = vmatpush1.msra.mxu0 0.0
    %1814 = vmatprep.mubr.f32.mxu0 0.0
    %1815 = vmatmul.mubr.f32.gmra.mrb[0].mxu0 %v1745
    %v1816 = vpop.f32.mrb[0].mxu0
    %v1817 = vadd.f32 %v1736, %v1816
    %v1818 = vpop.f32.mrb[0].mxu0
    %1819 = vmatprep.mubr.f32.mxu0 0.0
    %1820 = vmatmul.mubr.f32.gmra.mrb[0].mxu0 %v1748
    %v1821 = vpop.f32.mrb[0].mxu0
    %v1822 = vadd.f32 %v1741, %v1821
    %v1823 = vpop.f32.mrb[0].mxu0
    %1824 = vdwg.mxu0
    %1825 = vst [vmem:[#allocation2] sm:$0xff] %v1817
    %1826 = vst [vmem:[#allocation2 + $0x8] sm:$0xff] %v1822
    // Predicated region
    $region46: #{gcn_layer_forward.1} parent=1 // pred_check
      _
    $region47: #{gcn_layer_forward.1} parent=1 // pred_check_branch
      %1828 = sbr.rel (0) target = $region49
    $region48: #{gcn_layer_forward.1} parent=1 // pred_region
      %s1830 = ssub.s32 256, 256
      %1831 = vsyncadd [#allocation3], %s1830
      %s1832 = sshll.u32 [#allocation2], 4
      %s1833 = int_to_ptr.vmem [resolvable:$true] %s1832
      %1838 = dma.vmem_to_hbm [thread:$0]  %s1833, 256, %s11, [#allocation3], 128, 128, 8
    $region49: #{gcn_layer_forward.1} parent=1 // pred_fallthru
      _
    // Predicated region
    $region50: #{gcn_layer_forward.1} parent=1 // pred_check
      _
    $region51: #{gcn_layer_forward.1} parent=1 // pred_check_branch
      %1840 = sbr.rel (0) target = $region53
    $region52: #{gcn_layer_forward.1} parent=1 // pred_region
      %1841 = dma.done [#allocation3], 256
    $region53: #{gcn_layer_forward.1} parent=1 // pred_fallthru
      _
    %1842 = vsyncpa [#allocation3], 1

</llo_original>
